<compile_context>
chip_gen: v7x
topology: tpu7x:2x2x1
jax: 0.10.0
libtpu: 0.0.40
codegen_flags: <defaults>
</compile_context>

<pallas_src>
import functools

import numpy as np
import jax
import jax.numpy as jnp
from jax import lax
from jax.experimental import pallas as pl
from jax.experimental.pallas import tpu as pltpu


# dot_general dimension numbers
_DN_TRANS_B = (((1,), (1,)), ((), ()))   # (N,K) x (M,K) -> (N,M)   (a @ b.T)
_DN_PLAIN   = (((1,), (0,)), ((), ()))   # (N,K) x (K,M) -> (N,M)   (a @ b)


# ----------------------------------------------------------------------------
# Fused kernel
# ----------------------------------------------------------------------------
def _fused_attn_kernel(x_src_ref, x_dst_ref, ws_w_ref, ws_b_ref,
                       wd_w_ref, wd_b_ref, bias_ref, ps_ref, pd_ref,
                       alpha_ref, ce_src_ref, ce_dst_ref,
                       *, heads, attn_channels, negative_slope):
    H, C = heads, attn_channels
    n_src = x_src_ref.shape[0]
    n_dst = x_dst_ref.shape[0]
    inv_h = jnp.float32(1.0 / H)

    x_src = x_src_ref[...]
    x_dst = x_dst_ref[...]
    bias = bias_ref[...]

    # ---- Linear projections, one (N, C) column block per j -----------------
    # Ys_j = x_src @ W_j^T + b_j  with W_j = Ws_w[j*C:(j+1)*C, :]
    # (trans_b dot_general: no wrapper transpose, no in-kernel .T)
    ys_blocks, yd_blocks = [], []
    for j in range(H):
        ys_blocks.append(
            lax.dot_general(x_src, ws_w_ref[j * C:(j + 1) * C, :], _DN_TRANS_B,
                            preferred_element_type=jnp.float32)
            + ws_b_ref[:, j * C:(j + 1) * C])
        yd_blocks.append(
            lax.dot_general(x_dst, wd_w_ref[j * C:(j + 1) * C, :], _DN_TRANS_B,
                            preferred_element_type=jnp.float32)
            + wd_b_ref[:, j * C:(j + 1) * C])

    ce_src = jnp.zeros((n_src, C), jnp.float32)
    ce_dst = jnp.zeros((n_dst, C), jnp.float32)
    score_sum = jnp.zeros((n_src, n_dst), jnp.float32)

    # ---- Per-head: assemble torch-.view heads via exact permutation matmuls,
    # then score matmul + leaky-relu + head accumulation. H is a small static
    # int -> unrolled Python loops keep everything 2-D for the MXU.
    for h in range(H):
        ys_h = jnp.zeros((n_src, C), jnp.float32)
        yd_h = jnp.zeros((n_dst, C), jnp.float32)
        for j in range(H):
            ps_hj = ps_ref[(h * H + j) * n_src:(h * H + j + 1) * n_src, :]
            pd_hj = pd_ref[(h * H + j) * n_dst:(h * H + j + 1) * n_dst, :]
            ys_h = ys_h + lax.dot_general(ps_hj, ys_blocks[j], _DN_PLAIN,
                                          preferred_element_type=jnp.float32)
            yd_h = yd_h + lax.dot_general(pd_hj, yd_blocks[j], _DN_PLAIN,
                                          preferred_element_type=jnp.float32)
        yd_h = yd_h + bias                      # x_dst += bias.view(1, -1, C)
        ce_src = ce_src + ys_h
        ce_dst = ce_dst + yd_h
        s = lax.dot_general(ys_h, yd_h, _DN_TRANS_B,   # ys_h @ yd_h^T (no .T)
                            preferred_element_type=jnp.float32)
        score_sum = score_sum + jnp.where(s >= 0, s, negative_slope * s)

    # cluster_embed halves: two tile-aligned outputs (concatenated in wrapper)
    ce_src_ref[...] = ce_src * inv_h
    ce_dst_ref[...] = ce_dst * inv_h

    # alpha = softmax(mean_h(leaky_relu(scores)), dim=1), max-stabilized.
    # The divide is done with an approximate reciprocal on the EUP slot.
    a = score_sum * inv_h
    a = a - jnp.max(a, axis=1, keepdims=True)
    e = jnp.exp(a)
    alpha_ref[...] = e * pl.reciprocal(jnp.sum(e, axis=1, keepdims=True),
                                       approx=True)


# ----------------------------------------------------------------------------
# Host-side constant: permutation matrices that reproduce torch .view(H, N, C)
# ----------------------------------------------------------------------------
def _build_view_perm(n, heads):
    """P[h, j] selects rows of the j-th column block Y_j = Y[:, j*C:(j+1)*C]
    such that  sum_j P[h, j] @ Y_j == Y.view(heads, n, C)[h]  (torch .view
    C-order reinterpretation of a (n, heads*C) tensor).  Returned stacked as a
    2-D (heads*heads*n, n) f32 array for maximally simple in-kernel slicing."""
    p = np.zeros((heads, heads, n, n), np.float32)
    for h in range(heads):
        for n_prime in range(n):
            r = h * n + n_prime
            p[h, r % heads, n_prime, r // heads] = 1.0
    return jnp.asarray(p.reshape(heads * heads * n, n))


# ----------------------------------------------------------------------------
# AttnLayer forward (single pallas_call)
# ----------------------------------------------------------------------------
def attn_layer_forward(params, x_src, x_dst, *, heads, attn_channels,
                       num_parts, negative_slope=0.2):
    H, C = heads, attn_channels
    n_src, n_dst = x_src.shape[0], x_dst.shape[0]
    assert n_dst == num_parts

    ps = _build_view_perm(n_src, H)            # (H*H*n_src, n_src), constant
    pd = _build_view_perm(n_dst, H)            # (H*H*n_dst, n_dst), constant
    ws_b2 = params["Ws_b"].reshape(1, H * C)
    wd_b2 = params["Wd_b"].reshape(1, H * C)

    vmem = pl.BlockSpec(memory_space=pltpu.MemorySpace.VMEM)
    kern = functools.partial(_fused_attn_kernel, heads=H, attn_channels=C,
                             negative_slope=negative_slope)
    alpha, ce_src, ce_dst = pl.pallas_call(
        kern,
        out_shape=(
            jax.ShapeDtypeStruct((n_src, n_dst), jnp.float32),   # alpha
            jax.ShapeDtypeStruct((n_src, C), jnp.float32),       # src mean
            jax.ShapeDtypeStruct((n_dst, C), jnp.float32),       # dst mean
        ),
        in_specs=[vmem] * 9,
        out_specs=(vmem, vmem, vmem),
    )(x_src, x_dst, params["Ws_w"], ws_b2, params["Wd_w"], wd_b2,
      params["bias"], ps, pd)

    cluster_embed = jnp.concatenate([ce_src, ce_dst], axis=0)
    return alpha, cluster_embed


# ----------------------------------------------------------------------------
# Pure-JAX reference (mirrors the torch forward exactly) for verification.
# ----------------------------------------------------------------------------
def attn_layer_reference(params, x_src, x_dst, *, heads, attn_channels,
                         num_parts, negative_slope=0.2):
    H, C = heads, attn_channels
    n_src, n_dst = x_src.shape[0], x_dst.shape[0]
    ys = x_src @ params["Ws_w"].T + params["Ws_b"]
    yd = x_dst @ params["Wd_w"].T + params["Wd_b"]
    ys = ys.reshape(H, n_src, C)
    yd = yd.reshape(H, n_dst, C) + params["bias"].reshape(1, -1, C)
    cluster_embed = jnp.concatenate([ys.mean(0), yd.mean(0)], axis=0)
    alpha = jnp.einsum("hnc,hmc->hnm", ys, yd)
    alpha = jnp.where(alpha >= 0, alpha, negative_slope * alpha).mean(0)
    alpha = jax.nn.softmax(alpha, axis=1)
    return alpha, cluster_embed


# ----------------------------------------------------------------------------
# Deterministic parameter init (synthetic; mirrors the __init__ shapes)
# ----------------------------------------------------------------------------
def init_params(key, in_channels, attn_channels, heads, num_parts):
    out = heads * attn_channels
    k1, k2, k3, k4, k5 = jax.random.split(key, 5)
    lim = 1.0 / jnp.sqrt(jnp.float32(in_channels))
    return {
        "Ws_w": jax.random.uniform(k1, (out, in_channels), jnp.float32, -lim, lim),
        "Ws_b": jax.random.uniform(k2, (out,), jnp.float32, -lim, lim),
        "Wd_w": jax.random.uniform(k3, (out, in_channels), jnp.float32, -lim, lim),
        "Wd_b": jax.random.uniform(k4, (out,), jnp.float32, -lim, lim),
        # kaiming_normal_ on (num_parts, attn_channels): std = sqrt(2 / fan_in)
        "bias": jax.random.normal(k5, (num_parts, attn_channels), jnp.float32)
                * jnp.sqrt(2.0 / attn_channels),
    }


if __name__ == "__main__":
    in_channels = 32
    attn_channels = 16
    heads = 2
    num_parts = 8
    n_src = 16

    key = jax.random.PRNGKey(0)
    kp, kx, kd = jax.random.split(key, 3)
    params = init_params(kp, in_channels, attn_channels, heads, num_parts)
    x_src = jax.random.normal(kx, (n_src, in_channels), jnp.float32)
    x_dst = jax.random.normal(kd, (num_parts, in_channels), jnp.float32)

    alpha, cluster_embed = attn_layer_forward(
        params, x_src, x_dst,
        heads=heads, attn_channels=attn_channels,
        num_parts=num_parts, negative_slope=0.2)
    jax.block_until_ready((alpha, cluster_embed))

    alpha_ref, ce_ref = attn_layer_reference(
        params, x_src, x_dst,
        heads=heads, attn_channels=attn_channels,
        num_parts=num_parts, negative_slope=0.2)

    assert alpha.shape == (n_src, num_parts)
    assert cluster_embed.shape == (n_src + num_parts, attn_channels)
    # alpha tolerance is loosened slightly for pl.reciprocal(approx=True)
    assert jnp.allclose(alpha, alpha_ref, rtol=2e-3, atol=2e-3), "alpha mismatch"
    assert jnp.allclose(cluster_embed, ce_ref, rtol=1e-4, atol=1e-5), "embed mismatch"

    print("KERNEL_OK")
</pallas_src>

<mosaic_0001>
module attributes {stable_mosaic.version = 11 : i64} {
  func.func @_fused_attn_kernel(%arg0: memref<16x32xf32, #tpu.memory_space<vmem>>, %arg1: memref<8x32xf32, #tpu.memory_space<vmem>>, %arg2: memref<32x32xf32, #tpu.memory_space<vmem>>, %arg3: memref<1x32xf32, #tpu.memory_space<vmem>>, %arg4: memref<32x32xf32, #tpu.memory_space<vmem>>, %arg5: memref<1x32xf32, #tpu.memory_space<vmem>>, %arg6: memref<8x16xf32, #tpu.memory_space<vmem>>, %arg7: memref<64x16xf32, #tpu.memory_space<vmem>>, %arg8: memref<32x8xf32, #tpu.memory_space<vmem>>, %arg9: memref<16x8xf32, #tpu.memory_space<vmem>>, %arg10: memref<16x16xf32, #tpu.memory_space<vmem>>, %arg11: memref<8x16xf32, #tpu.memory_space<vmem>>) attributes {dimension_semantics = [], scalar_prefetch = 0 : i64, scratch_operands = 0 : i64, tpu.core_type = #tpu.core_type<tc>} {
    %c0 = arith.constant 0 : index
    %c0_0 = arith.constant 0 : index
    %0 = vector.load %arg0[%c0, %c0_0] : memref<16x32xf32, #tpu.memory_space<vmem>>, vector<16x32xf32>
    %c0_1 = arith.constant 0 : index
    %c0_2 = arith.constant 0 : index
    %1 = vector.load %arg1[%c0_1, %c0_2] : memref<8x32xf32, #tpu.memory_space<vmem>>, vector<8x32xf32>
    %c0_3 = arith.constant 0 : index
    %c0_4 = arith.constant 0 : index
    %2 = vector.load %arg6[%c0_3, %c0_4] : memref<8x16xf32, #tpu.memory_space<vmem>>, vector<8x16xf32>
    %c0_5 = arith.constant 0 : index
    %c0_6 = arith.constant 0 : index
    %3 = vector.load %arg2[%c0_5, %c0_6] : memref<32x32xf32, #tpu.memory_space<vmem>>, vector<16x32xf32>
    %cst = arith.constant dense<0.000000e+00> : vector<16x16xf32>
    %4 = tpu.matmul %0, %3, %cst {dimension_numbers = #tpu.dot_dimension_numbers<[1], [1], [0], [0], [0, 0, 1, 0], [], []>} : vector<16x32xf32>, vector<16x32xf32>, vector<16x16xf32> -> vector<16x16xf32>
    %c0_7 = arith.constant 0 : index
    %c0_8 = arith.constant 0 : index
    %5 = vector.load %arg3[%c0_7, %c0_8] : memref<1x32xf32, #tpu.memory_space<vmem>>, vector<1x16xf32>
    %6 = vector.broadcast %5 : vector<1x16xf32> to vector<16x16xf32>
    %7 = arith.addf %4, %6 : vector<16x16xf32>
    %c0_9 = arith.constant 0 : index
    %c0_10 = arith.constant 0 : index
    %8 = vector.load %arg4[%c0_9, %c0_10] : memref<32x32xf32, #tpu.memory_space<vmem>>, vector<16x32xf32>
    %cst_11 = arith.constant dense<0.000000e+00> : vector<8x16xf32>
    %9 = tpu.matmul %1, %8, %cst_11 {dimension_numbers = #tpu.dot_dimension_numbers<[1], [1], [0], [0], [0, 0, 1, 0], [], []>} : vector<8x32xf32>, vector<16x32xf32>, vector<8x16xf32> -> vector<8x16xf32>
    %c0_12 = arith.constant 0 : index
    %c0_13 = arith.constant 0 : index
    %10 = vector.load %arg5[%c0_12, %c0_13] : memref<1x32xf32, #tpu.memory_space<vmem>>, vector<1x16xf32>
    %11 = vector.broadcast %10 : vector<1x16xf32> to vector<8x16xf32>
    %12 = arith.addf %9, %11 : vector<8x16xf32>
    %c16 = arith.constant 16 : index
    %c0_14 = arith.constant 0 : index
    %13 = vector.load %arg2[%c16, %c0_14] : memref<32x32xf32, #tpu.memory_space<vmem>>, vector<16x32xf32>
    %cst_15 = arith.constant dense<0.000000e+00> : vector<16x16xf32>
    %14 = tpu.matmul %0, %13, %cst_15 {dimension_numbers = #tpu.dot_dimension_numbers<[1], [1], [0], [0], [0, 0, 1, 0], [], []>} : vector<16x32xf32>, vector<16x32xf32>, vector<16x16xf32> -> vector<16x16xf32>
    %c0_16 = arith.constant 0 : index
    %c16_17 = arith.constant 16 : index
    %15 = vector.load %arg3[%c0_16, %c16_17] : memref<1x32xf32, #tpu.memory_space<vmem>>, vector<1x16xf32>
    %16 = vector.broadcast %15 : vector<1x16xf32> to vector<16x16xf32>
    %17 = arith.addf %14, %16 : vector<16x16xf32>
    %c16_18 = arith.constant 16 : index
    %c0_19 = arith.constant 0 : index
    %18 = vector.load %arg4[%c16_18, %c0_19] : memref<32x32xf32, #tpu.memory_space<vmem>>, vector<16x32xf32>
    %cst_20 = arith.constant dense<0.000000e+00> : vector<8x16xf32>
    %19 = tpu.matmul %1, %18, %cst_20 {dimension_numbers = #tpu.dot_dimension_numbers<[1], [1], [0], [0], [0, 0, 1, 0], [], []>} : vector<8x32xf32>, vector<16x32xf32>, vector<8x16xf32> -> vector<8x16xf32>
    %c0_21 = arith.constant 0 : index
    %c16_22 = arith.constant 16 : index
    %20 = vector.load %arg5[%c0_21, %c16_22] : memref<1x32xf32, #tpu.memory_space<vmem>>, vector<1x16xf32>
    %21 = vector.broadcast %20 : vector<1x16xf32> to vector<8x16xf32>
    %22 = arith.addf %19, %21 : vector<8x16xf32>
    %cst_23 = arith.constant 0.000000e+00 : f32
    %23 = vector.broadcast %cst_23 : f32 to vector<16x16xf32>
    %cst_24 = arith.constant 0.000000e+00 : f32
    %24 = vector.broadcast %cst_24 : f32 to vector<8x16xf32>
    %cst_25 = arith.constant 0.000000e+00 : f32
    %25 = vector.broadcast %cst_25 : f32 to vector<16x8xf32>
    %cst_26 = arith.constant 0.000000e+00 : f32
    %26 = vector.broadcast %cst_26 : f32 to vector<16x16xf32>
    %cst_27 = arith.constant 0.000000e+00 : f32
    %27 = vector.broadcast %cst_27 : f32 to vector<8x16xf32>
    %c0_28 = arith.constant 0 : index
    %c0_29 = arith.constant 0 : index
    %28 = vector.load %arg7[%c0_28, %c0_29] : memref<64x16xf32, #tpu.memory_space<vmem>>, vector<16x16xf32>
    %c0_30 = arith.constant 0 : index
    %c0_31 = arith.constant 0 : index
    %29 = vector.load %arg8[%c0_30, %c0_31] : memref<32x8xf32, #tpu.memory_space<vmem>>, vector<8x8xf32>
    %cst_32 = arith.constant dense<0.000000e+00> : vector<16x16xf32>
    %30 = tpu.matmul %28, %7, %cst_32 {dimension_numbers = #tpu.dot_dimension_numbers<[1], [0], [0], [1], [0, 0, 1, 1], [], []>} : vector<16x16xf32>, vector<16x16xf32>, vector<16x16xf32> -> vector<16x16xf32>
    %31 = arith.addf %26, %30 : vector<16x16xf32>
    %cst_33 = arith.constant dense<0.000000e+00> : vector<8x16xf32>
    %32 = tpu.matmul %29, %12, %cst_33 {dimension_numbers = #tpu.dot_dimension_numbers<[1], [0], [0], [1], [0, 0, 1, 1], [], []>} : vector<8x8xf32>, vector<8x16xf32>, vector<8x16xf32> -> vector<8x16xf32>
    %33 = arith.addf %27, %32 : vector<8x16xf32>
    %c16_34 = arith.constant 16 : index
    %c0_35 = arith.constant 0 : index
    %34 = vector.load %arg7[%c16_34, %c0_35] : memref<64x16xf32, #tpu.memory_space<vmem>>, vector<16x16xf32>
    %c8 = arith.constant 8 : index
    %c0_36 = arith.constant 0 : index
    %35 = vector.load %arg8[%c8, %c0_36] : memref<32x8xf32, #tpu.memory_space<vmem>>, vector<8x8xf32>
    %cst_37 = arith.constant dense<0.000000e+00> : vector<16x16xf32>
    %36 = tpu.matmul %34, %17, %cst_37 {dimension_numbers = #tpu.dot_dimension_numbers<[1], [0], [0], [1], [0, 0, 1, 1], [], []>} : vector<16x16xf32>, vector<16x16xf32>, vector<16x16xf32> -> vector<16x16xf32>
    %37 = arith.addf %31, %36 : vector<16x16xf32>
    %cst_38 = arith.constant dense<0.000000e+00> : vector<8x16xf32>
    %38 = tpu.matmul %35, %22, %cst_38 {dimension_numbers = #tpu.dot_dimension_numbers<[1], [0], [0], [1], [0, 0, 1, 1], [], []>} : vector<8x8xf32>, vector<8x16xf32>, vector<8x16xf32> -> vector<8x16xf32>
    %39 = arith.addf %33, %38 : vector<8x16xf32>
    %40 = arith.addf %39, %2 : vector<8x16xf32>
    %41 = arith.addf %23, %37 : vector<16x16xf32>
    %42 = arith.addf %24, %40 : vector<8x16xf32>
    %cst_39 = arith.constant dense<0.000000e+00> : vector<16x8xf32>
    %43 = tpu.matmul %37, %40, %cst_39 {dimension_numbers = #tpu.dot_dimension_numbers<[1], [1], [0], [0], [0, 0, 1, 0], [], []>} : vector<16x16xf32>, vector<8x16xf32>, vector<16x8xf32> -> vector<16x8xf32>
    %cst_40 = arith.constant 0.000000e+00 : f32
    %44 = vector.broadcast %cst_40 : f32 to vector<16x8xf32>
    %45 = arith.cmpf oge, %43, %44 : vector<16x8xf32>
    %cst_41 = arith.constant 2.000000e-01 : f32
    %46 = vector.broadcast %cst_41 : f32 to vector<16x8xf32>
    %47 = arith.mulf %46, %43 : vector<16x8xf32>
    %48 = arith.select %45, %43, %47 : vector<16x8xi1>, vector<16x8xf32>
    %49 = arith.addf %25, %48 : vector<16x8xf32>
    %cst_42 = arith.constant 0.000000e+00 : f32
    %50 = vector.broadcast %cst_42 : f32 to vector<16x16xf32>
    %cst_43 = arith.constant 0.000000e+00 : f32
    %51 = vector.broadcast %cst_43 : f32 to vector<8x16xf32>
    %c32 = arith.constant 32 : index
    %c0_44 = arith.constant 0 : index
    %52 = vector.load %arg7[%c32, %c0_44] : memref<64x16xf32, #tpu.memory_space<vmem>>, vector<16x16xf32>
    %c16_45 = arith.constant 16 : index
    %c0_46 = arith.constant 0 : index
    %53 = vector.load %arg8[%c16_45, %c0_46] : memref<32x8xf32, #tpu.memory_space<vmem>>, vector<8x8xf32>
    %cst_47 = arith.constant dense<0.000000e+00> : vector<16x16xf32>
    %54 = tpu.matmul %52, %7, %cst_47 {dimension_numbers = #tpu.dot_dimension_numbers<[1], [0], [0], [1], [0, 0, 1, 1], [], []>} : vector<16x16xf32>, vector<16x16xf32>, vector<16x16xf32> -> vector<16x16xf32>
    %55 = arith.addf %50, %54 : vector<16x16xf32>
    %cst_48 = arith.constant dense<0.000000e+00> : vector<8x16xf32>
    %56 = tpu.matmul %53, %12, %cst_48 {dimension_numbers = #tpu.dot_dimension_numbers<[1], [0], [0], [1], [0, 0, 1, 1], [], []>} : vector<8x8xf32>, vector<8x16xf32>, vector<8x16xf32> -> vector<8x16xf32>
    %57 = arith.addf %51, %56 : vector<8x16xf32>
    %c48 = arith.constant 48 : index
    %c0_49 = arith.constant 0 : index
    %58 = vector.load %arg7[%c48, %c0_49] : memref<64x16xf32, #tpu.memory_space<vmem>>, vector<16x16xf32>
    %c24 = arith.constant 24 : index
    %c0_50 = arith.constant 0 : index
    %59 = vector.load %arg8[%c24, %c0_50] : memref<32x8xf32, #tpu.memory_space<vmem>>, vector<8x8xf32>
    %cst_51 = arith.constant dense<0.000000e+00> : vector<16x16xf32>
    %60 = tpu.matmul %58, %17, %cst_51 {dimension_numbers = #tpu.dot_dimension_numbers<[1], [0], [0], [1], [0, 0, 1, 1], [], []>} : vector<16x16xf32>, vector<16x16xf32>, vector<16x16xf32> -> vector<16x16xf32>
    %61 = arith.addf %55, %60 : vector<16x16xf32>
    %cst_52 = arith.constant dense<0.000000e+00> : vector<8x16xf32>
    %62 = tpu.matmul %59, %22, %cst_52 {dimension_numbers = #tpu.dot_dimension_numbers<[1], [0], [0], [1], [0, 0, 1, 1], [], []>} : vector<8x8xf32>, vector<8x16xf32>, vector<8x16xf32> -> vector<8x16xf32>
    %63 = arith.addf %57, %62 : vector<8x16xf32>
    %64 = arith.addf %63, %2 : vector<8x16xf32>
    %65 = arith.addf %41, %61 : vector<16x16xf32>
    %66 = arith.addf %42, %64 : vector<8x16xf32>
    %cst_53 = arith.constant dense<0.000000e+00> : vector<16x8xf32>
    %67 = tpu.matmul %61, %64, %cst_53 {dimension_numbers = #tpu.dot_dimension_numbers<[1], [1], [0], [0], [0, 0, 1, 0], [], []>} : vector<16x16xf32>, vector<8x16xf32>, vector<16x8xf32> -> vector<16x8xf32>
    %cst_54 = arith.constant 0.000000e+00 : f32
    %68 = vector.broadcast %cst_54 : f32 to vector<16x8xf32>
    %69 = arith.cmpf oge, %67, %68 : vector<16x8xf32>
    %cst_55 = arith.constant 2.000000e-01 : f32
    %70 = vector.broadcast %cst_55 : f32 to vector<16x8xf32>
    %71 = arith.mulf %70, %67 : vector<16x8xf32>
    %72 = arith.select %69, %67, %71 : vector<16x8xi1>, vector<16x8xf32>
    %73 = arith.addf %49, %72 : vector<16x8xf32>
    %cst_56 = arith.constant 5.000000e-01 : f32
    %74 = vector.broadcast %cst_56 : f32 to vector<16x16xf32>
    %75 = arith.mulf %65, %74 : vector<16x16xf32>
    %c0_57 = arith.constant 0 : index
    %c0_58 = arith.constant 0 : index
    %76 = vector.load %arg10[%c0_57, %c0_58] : memref<16x16xf32, #tpu.memory_space<vmem>>, vector<16x16xf32>
    tpu.vector_store %arg10[%c0_57, %c0_58], %75 {strides = array<i32>} : memref<16x16xf32, #tpu.memory_space<vmem>>, vector<16x16xf32>,
    %cst_59 = arith.constant 5.000000e-01 : f32
    %77 = vector.broadcast %cst_59 : f32 to vector<8x16xf32>
    %78 = arith.mulf %66, %77 : vector<8x16xf32>
    %c0_60 = arith.constant 0 : index
    %c0_61 = arith.constant 0 : index
    %79 = vector.load %arg11[%c0_60, %c0_61] : memref<8x16xf32, #tpu.memory_space<vmem>>, vector<8x16xf32>
    tpu.vector_store %arg11[%c0_60, %c0_61], %78 {strides = array<i32>} : memref<8x16xf32, #tpu.memory_space<vmem>>, vector<8x16xf32>,
    %cst_62 = arith.constant 5.000000e-01 : f32
    %80 = vector.broadcast %cst_62 : f32 to vector<16x8xf32>
    %81 = arith.mulf %73, %80 : vector<16x8xf32>
    %cst_63 = arith.constant dense<0xFF800000> : vector<16xf32>
    %82 = vector.multi_reduction <maximumf>, %81, %cst_63 [1] : vector<16x8xf32> to vector<16xf32>
    %83 = vector.shape_cast %82 : vector<16xf32> to vector<16x1xf32>
    %84 = vector.broadcast %83 : vector<16x1xf32> to vector<16x8xf32>
    %85 = arith.subf %81, %84 : vector<16x8xf32>
    %86 = math.exp %85 : vector<16x8xf32>
    %cst_64 = arith.constant dense<0.000000e+00> : vector<16xf32>
    %87 = vector.multi_reduction <add>, %86, %cst_64 [1] : vector<16x8xf32> to vector<16xf32>
    %88 = vector.shape_cast %87 : vector<16xf32> to vector<16x1xf32>
    %89 = tpu.reciprocal %88 {approx = true} : vector<16x1xf32> -> vector<16x1xf32>
    %90 = vector.broadcast %89 : vector<16x1xf32> to vector<16x8xf32>
    %91 = arith.mulf %86, %90 : vector<16x8xf32>
    %c0_65 = arith.constant 0 : index
    %c0_66 = arith.constant 0 : index
    %92 = vector.load %arg9[%c0_65, %c0_66] : memref<16x8xf32, #tpu.memory_space<vmem>>, vector<16x8xf32>
    tpu.vector_store %arg9[%c0_65, %c0_66], %91 {strides = array<i32>} : memref<16x8xf32, #tpu.memory_space<vmem>>, vector<16x8xf32>,
    return
  }
}

</mosaic_0001>

<llo_original>
// kernel: tpu_custom_call.1
$region0: #{tpu_custom_call.1}
  #allocation0 [shape = 'u32[]', space=smem, size = 0x4, offset = 0x4, fixed_abs, tag = 'smem constant byte address 0x4 - core index']
  #allocation1 [shape = 'u32[144,128]{1,0:T(1,128)}', space=vmem, size = 0x12000, scoped, tag = 'internal scratch']
  %s0 = inlined_call_operand.vmem [shape: f32[16,32], index: 0, kind: input, shape index: {}]
  %s1 = inlined_call_operand.vmem [shape: f32[8,32], index: 1, kind: input, shape index: {}]
  %s2 = inlined_call_operand.vmem [shape: f32[32,32], index: 2, kind: input, shape index: {}]
  %s3 = inlined_call_operand.vmem [shape: f32[1,32], index: 3, kind: input, shape index: {}]
  %s4 = inlined_call_operand.vmem [shape: f32[32,32], index: 4, kind: input, shape index: {}]
  %s5 = inlined_call_operand.vmem [shape: f32[1,32], index: 5, kind: input, shape index: {}]
  %s6 = inlined_call_operand.vmem [shape: f32[8,16], index: 6, kind: input, shape index: {}]
  %s7 = inlined_call_operand.vmem [shape: f32[64,16], index: 7, kind: input, shape index: {}]
  %s8 = inlined_call_operand.vmem [shape: f32[32,8], index: 8, kind: input, shape index: {}]
  %s9 = inlined_call_operand.vmem [shape: f32[16,8], index: 9, kind: output, shape index: {0}]
  %s10 = inlined_call_operand.hbm [shape: f32[16,16], index: 10, kind: output, shape index: {1}]
  %s11 = inlined_call_operand.hbm [shape: f32[8,16], index: 11, kind: output, shape index: {2}]
  %12 = xla_tuple %s9, %s10, %s11
  %s13 = sld [smem:[#allocation0]]
  $region62: #{tpu_custom_call.1} parent=0
    _
  %s15 = ssub.s32 1, %s13
  %s16 = scalar_select 0, %s15, %s13
  $region1: #{tpu_custom_call.1} parent=0
    #allocation2 [shape = 'u8[8192]{0}', space=vmem, size = 0x2000, scoped, tag = 'output window, operand 1, single buffered']
    #allocation3 [shape = 's32[1]{0}', space=sflag, size = 0x4, scoped, tag = 'scoped memory for tpu_custom_call.1']
    #allocation4 [shape = 'u8[4096]{0}', space=vmem, size = 0x1000, scoped, tag = 'output window, operand 2, single buffered']
    #allocation5 [shape = 's32[1]{0}', space=sflag, size = 0x4, scoped, tag = 'scoped memory for tpu_custom_call.1']
    %17 = vsyncpa [#allocation3], 0
    %18 = vsyncpa [#allocation5], 0
    // Predicated region
    $region2: #{tpu_custom_call.1} parent=1 // pred_check
      _
    $region3: #{tpu_custom_call.1} parent=1 // pred_check_branch
      %20 = sbr.rel (0) target = $region5
    $region4: #{tpu_custom_call.1} parent=1 // pred_region
      _
    $region5: #{tpu_custom_call.1} parent=1 // pred_fallthru
      _
    // Predicated region
    $region6: #{tpu_custom_call.1} parent=1 // pred_check
      _
    $region7: #{tpu_custom_call.1} parent=1 // pred_check_branch
      %22 = sbr.rel (0) target = $region9
    $region8: #{tpu_custom_call.1} parent=1 // pred_region
      _
    $region9: #{tpu_custom_call.1} parent=1 // pred_fallthru
      _
    // Predicated region
    $region10: #{tpu_custom_call.1} parent=1 // pred_check
      _
    $region11: #{tpu_custom_call.1} parent=1 // pred_check_branch
      %24 = sbr.rel (0) target = $region13
    $region12: #{tpu_custom_call.1} parent=1 // pred_region
      _
    $region13: #{tpu_custom_call.1} parent=1 // pred_fallthru
      _
    // Predicated region
    $region14: #{tpu_custom_call.1} parent=1 // pred_check
      _
    $region15: #{tpu_custom_call.1} parent=1 // pred_check_branch
      %26 = sbr.rel (0) target = $region17
    $region16: #{tpu_custom_call.1} parent=1 // pred_region
      _
    $region17: #{tpu_custom_call.1} parent=1 // pred_fallthru
      _
    // Predicated region
    $region18: #{tpu_custom_call.1} parent=1 // pred_check
      _
    $region19: #{tpu_custom_call.1} parent=1 // pred_check_branch
      %28 = sbr.rel (0) target = $region21
    $region20: #{tpu_custom_call.1} parent=1 // pred_region
      _
    $region21: #{tpu_custom_call.1} parent=1 // pred_fallthru
      _
    // Predicated region
    $region22: #{tpu_custom_call.1} parent=1 // pred_check
      _
    $region23: #{tpu_custom_call.1} parent=1 // pred_check_branch
      %30 = sbr.rel (0) target = $region25
    $region24: #{tpu_custom_call.1} parent=1 // pred_region
      _
    $region25: #{tpu_custom_call.1} parent=1 // pred_fallthru
      _
    // Predicated region
    $region26: #{tpu_custom_call.1} parent=1 // pred_check
      _
    $region27: #{tpu_custom_call.1} parent=1 // pred_check_branch
      %32 = sbr.rel (0) target = $region29
    $region28: #{tpu_custom_call.1} parent=1 // pred_region
      _
    $region29: #{tpu_custom_call.1} parent=1 // pred_fallthru
      _
    // Predicated region
    $region30: #{tpu_custom_call.1} parent=1 // pred_check
      _
    $region31: #{tpu_custom_call.1} parent=1 // pred_check_branch
      %34 = sbr.rel (0) target = $region33
    $region32: #{tpu_custom_call.1} parent=1 // pred_region
      _
    $region33: #{tpu_custom_call.1} parent=1 // pred_fallthru
      _
    // Predicated region
    $region34: #{tpu_custom_call.1} parent=1 // pred_check
      _
    $region35: #{tpu_custom_call.1} parent=1 // pred_check_branch
      %36 = sbr.rel (0) target = $region37
    $region36: #{tpu_custom_call.1} parent=1 // pred_region
      _
    $region37: #{tpu_custom_call.1} parent=1 // pred_fallthru
      _
    %v37 = vld [vmem:[%s0] sm:$0xff]
    %v38 = vld [vmem:[%s0 + $0x8] sm:$0xff]
    %v39 = vld [vmem:[%s1] sm:$0xff]
    %v40 = vld [vmem:[%s6] sm:$0xff]
    %v41 = vld [vmem:[%s2] sm:$0xff]
    %v42 = vld [vmem:[%s2 + $0x8] sm:$0xff]
    %v43 = vld [vmem:[%s3] sm:$0x1]
    %v45 = vlaneseq
    %v46 = vshrl.u32 %v45, 7
    %v47 = vsub.s32 0, %v46
    %v48 = vrot.slane %v43, %v47
    %vm50 = vcmask 261120
    %v52 = vsel %vm50, %v37, 0
    %v55 = vsel %vm50, %v38, 0
    %v58 = vsel %vm50, %v41, 0
    %v61 = vsel %vm50, %v42, 0
    %63 = vmatprep.subr.mxu0 0.0
    %64 = vmatpush1.xpose.msra.mxu0 %v58
    %65 = vmatprep.subr.mxu0 0.0
    %66 = vmatpush1.xpose.msra.mxu0 %v61
    %67 = vmatprep.subr.mxu0 0.0
    %68 = vmatpush1.xpose.msra.mxu0 0.0
    %69 = vmatprep.subr.mxu0 0.0
    %70 = vmatpush1.xpose.msra.mxu0 0.0
    %71 = vmatprep.subr.mxu0 0.0
    %72 = vmatpush1.xpose.msra.mxu0 0.0
    %73 = vmatprep.subr.mxu0 0.0
    %74 = vmatpush1.xpose.msra.mxu0 0.0
    %75 = vmatprep.subr.mxu0 0.0
    %76 = vmatpush1.xpose.msra.mxu0 0.0
    %77 = vmatprep.subr.mxu0 0.0
    %78 = vmatpush1.xpose.msra.mxu0 0.0
    %79 = vmatprep.subr.mxu0 0.0
    %80 = vmatpush1.xpose.msra.mxu0 0.0
    %81 = vmatprep.subr.mxu0 0.0
    %82 = vmatpush1.xpose.msra.mxu0 0.0
    %83 = vmatprep.subr.mxu0 0.0
    %84 = vmatpush1.xpose.msra.mxu0 0.0
    %85 = vmatprep.subr.mxu0 0.0
    %86 = vmatpush1.xpose.msra.mxu0 0.0
    %87 = vmatprep.subr.mxu0 0.0
    %88 = vmatpush1.xpose.msra.mxu0 0.0
    %89 = vmatprep.subr.mxu0 0.0
    %90 = vmatpush1.xpose.msra.mxu0 0.0
    %91 = vmatprep.subr.mxu0 0.0
    %92 = vmatpush1.xpose.msra.mxu0 0.0
    %93 = vmatprep.subr.mxu0 0.0
    %94 = vmatpush1.xpose.msra.mxu0 0.0
    %95 = vmatprep.subr.mxu0 0.0
    %96 = vmatpush1.xpose.msra.mxu0 0.0
    %97 = vmatprep.subr.mxu0 0.0
    %98 = vmatpush1.xpose.msra.mxu0 0.0
    %99 = vmatprep.subr.mxu0 0.0
    %100 = vmatpush1.xpose.msra.mxu0 0.0
    %101 = vmatprep.subr.mxu0 0.0
    %102 = vmatpush1.xpose.msra.mxu0 0.0
    %103 = vmatprep.subr.mxu0 0.0
    %104 = vmatpush1.xpose.msra.mxu0 0.0
    %105 = vmatprep.subr.mxu0 0.0
    %106 = vmatpush1.xpose.msra.mxu0 0.0
    %107 = vmatprep.subr.mxu0 0.0
    %108 = vmatpush1.xpose.msra.mxu0 0.0
    %109 = vmatprep.subr.mxu0 0.0
    %110 = vmatpush1.xpose.msra.mxu0 0.0
    %111 = vmatprep.subr.mxu0 0.0
    %112 = vmatpush1.xpose.msra.mxu0 0.0
    %113 = vmatprep.subr.mxu0 0.0
    %114 = vmatpush1.xpose.msra.mxu0 0.0
    %115 = vmatprep.subr.mxu0 0.0
    %116 = vmatpush1.xpose.msra.mxu0 0.0
    %117 = vmatprep.subr.mxu0 0.0
    %118 = vmatpush1.xpose.msra.mxu0 0.0
    %119 = vmatprep.subr.mxu0 0.0
    %120 = vmatpush1.xpose.msra.mxu0 0.0
    %121 = vmatprep.subr.mxu0 0.0
    %122 = vmatpush1.xpose.msra.mxu0 0.0
    %123 = vmatprep.subr.mxu0 0.0
    %124 = vmatpush1.xpose.msra.mxu0 0.0
    %125 = vmatprep.subr.mxu0 0.0
    %126 = vmatpush1.xpose.msra.mxu0 0.0
    %127 = vmatprep.mubr.f32.mxu0 0.0
    %128 = vmatmul.mubr.f32.gmra.mrb[0].mxu0 %v52
    %v129 = vpop.f32.mrb[0].mxu0
    %v130 = vadd.f32 %v48, %v129
    %v131 = vpop.f32.mrb[0].mxu0
    %132 = vmatprep.mubr.f32.mxu0 0.0
    %133 = vmatmul.mubr.f32.gmra.mrb[0].mxu0 %v55
    %v134 = vpop.f32.mrb[0].mxu0
    %v135 = vadd.f32 %v48, %v134
    %v136 = vpop.f32.mrb[0].mxu0
    %137 = vdwg.mxu0
    %v138 = vld [vmem:[%s4] sm:$0xff]
    %v139 = vld [vmem:[%s4 + $0x8] sm:$0xff]
    %v140 = vld [vmem:[%s5] sm:$0x1]
    %v142 = vlaneseq
    %v143 = vshrl.u32 %v142, 7
    %v144 = vsub.s32 0, %v143
    %v145 = vrot.slane %v140, %v144
    %v148 = vsel %vm50, %v39, 0
    %v151 = vsel %vm50, %v138, 0
    %v154 = vsel %vm50, %v139, 0
    %156 = vmatprep.subr.mxu0 0.0
    %157 = vmatpush1.xpose.msra.mxu0 %v151
    %158 = vmatprep.subr.mxu0 0.0
    %159 = vmatpush1.xpose.msra.mxu0 %v154
    %160 = vmatprep.subr.mxu0 0.0
    %161 = vmatpush1.xpose.msra.mxu0 0.0
    %162 = vmatprep.subr.mxu0 0.0
    %163 = vmatpush1.xpose.msra.mxu0 0.0
    %164 = vmatprep.subr.mxu0 0.0
    %165 = vmatpush1.xpose.msra.mxu0 0.0
    %166 = vmatprep.subr.mxu0 0.0
    %167 = vmatpush1.xpose.msra.mxu0 0.0
    %168 = vmatprep.subr.mxu0 0.0
    %169 = vmatpush1.xpose.msra.mxu0 0.0
    %170 = vmatprep.subr.mxu0 0.0
    %171 = vmatpush1.xpose.msra.mxu0 0.0
    %172 = vmatprep.subr.mxu0 0.0
    %173 = vmatpush1.xpose.msra.mxu0 0.0
    %174 = vmatprep.subr.mxu0 0.0
    %175 = vmatpush1.xpose.msra.mxu0 0.0
    %176 = vmatprep.subr.mxu0 0.0
    %177 = vmatpush1.xpose.msra.mxu0 0.0
    %178 = vmatprep.subr.mxu0 0.0
    %179 = vmatpush1.xpose.msra.mxu0 0.0
    %180 = vmatprep.subr.mxu0 0.0
    %181 = vmatpush1.xpose.msra.mxu0 0.0
    %182 = vmatprep.subr.mxu0 0.0
    %183 = vmatpush1.xpose.msra.mxu0 0.0
    %184 = vmatprep.subr.mxu0 0.0
    %185 = vmatpush1.xpose.msra.mxu0 0.0
    %186 = vmatprep.subr.mxu0 0.0
    %187 = vmatpush1.xpose.msra.mxu0 0.0
    %188 = vmatprep.subr.mxu0 0.0
    %189 = vmatpush1.xpose.msra.mxu0 0.0
    %190 = vmatprep.subr.mxu0 0.0
    %191 = vmatpush1.xpose.msra.mxu0 0.0
    %192 = vmatprep.subr.mxu0 0.0
    %193 = vmatpush1.xpose.msra.mxu0 0.0
    %194 = vmatprep.subr.mxu0 0.0
    %195 = vmatpush1.xpose.msra.mxu0 0.0
    %196 = vmatprep.subr.mxu0 0.0
    %197 = vmatpush1.xpose.msra.mxu0 0.0
    %198 = vmatprep.subr.mxu0 0.0
    %199 = vmatpush1.xpose.msra.mxu0 0.0
    %200 = vmatprep.subr.mxu0 0.0
    %201 = vmatpush1.xpose.msra.mxu0 0.0
    %202 = vmatprep.subr.mxu0 0.0
    %203 = vmatpush1.xpose.msra.mxu0 0.0
    %204 = vmatprep.subr.mxu0 0.0
    %205 = vmatpush1.xpose.msra.mxu0 0.0
    %206 = vmatprep.subr.mxu0 0.0
    %207 = vmatpush1.xpose.msra.mxu0 0.0
    %208 = vmatprep.subr.mxu0 0.0
    %209 = vmatpush1.xpose.msra.mxu0 0.0
    %210 = vmatprep.subr.mxu0 0.0
    %211 = vmatpush1.xpose.msra.mxu0 0.0
    %212 = vmatprep.subr.mxu0 0.0
    %213 = vmatpush1.xpose.msra.mxu0 0.0
    %214 = vmatprep.subr.mxu0 0.0
    %215 = vmatpush1.xpose.msra.mxu0 0.0
    %216 = vmatprep.subr.mxu0 0.0
    %217 = vmatpush1.xpose.msra.mxu0 0.0
    %218 = vmatprep.subr.mxu0 0.0
    %219 = vmatpush1.xpose.msra.mxu0 0.0
    %220 = vmatprep.mubr.f32.mxu0 0.0
    %221 = vmatmul.mubr.f32.gmra.mrb[0].mxu0 %v148
    %v222 = vpop.f32.mrb[0].mxu0
    %v223 = vadd.f32 %v145, %v222
    %v224 = vpop.f32.mrb[0].mxu0
    %225 = vdwg.mxu0
    %v226 = vld [vmem:[%s2 + $0x10] sm:$0xff]
    %v227 = vld [vmem:[%s2 + $0x18] sm:$0xff]
    %228 = vrot.lane.b32.xlu0 %v48, 112
    %v229 = vpop.permute.xlu0 %228
    %v232 = vsel %vm50, %v226, 0
    %v235 = vsel %vm50, %v227, 0
    %237 = vmatprep.subr.mxu0 0.0
    %238 = vmatpush1.xpose.msra.mxu0 %v232
    %239 = vmatprep.subr.mxu0 0.0
    %240 = vmatpush1.xpose.msra.mxu0 %v235
    %241 = vmatprep.subr.mxu0 0.0
    %242 = vmatpush1.xpose.msra.mxu0 0.0
    %243 = vmatprep.subr.mxu0 0.0
    %244 = vmatpush1.xpose.msra.mxu0 0.0
    %245 = vmatprep.subr.mxu0 0.0
    %246 = vmatpush1.xpose.msra.mxu0 0.0
    %247 = vmatprep.subr.mxu0 0.0
    %248 = vmatpush1.xpose.msra.mxu0 0.0
    %249 = vmatprep.subr.mxu0 0.0
    %250 = vmatpush1.xpose.msra.mxu0 0.0
    %251 = vmatprep.subr.mxu0 0.0
    %252 = vmatpush1.xpose.msra.mxu0 0.0
    %253 = vmatprep.subr.mxu0 0.0
    %254 = vmatpush1.xpose.msra.mxu0 0.0
    %255 = vmatprep.subr.mxu0 0.0
    %256 = vmatpush1.xpose.msra.mxu0 0.0
    %257 = vmatprep.subr.mxu0 0.0
    %258 = vmatpush1.xpose.msra.mxu0 0.0
    %259 = vmatprep.subr.mxu0 0.0
    %260 = vmatpush1.xpose.msra.mxu0 0.0
    %261 = vmatprep.subr.mxu0 0.0
    %262 = vmatpush1.xpose.msra.mxu0 0.0
    %263 = vmatprep.subr.mxu0 0.0
    %264 = vmatpush1.xpose.msra.mxu0 0.0
    %265 = vmatprep.subr.mxu0 0.0
    %266 = vmatpush1.xpose.msra.mxu0 0.0
    %267 = vmatprep.subr.mxu0 0.0
    %268 = vmatpush1.xpose.msra.mxu0 0.0
    %269 = vmatprep.subr.mxu0 0.0
    %270 = vmatpush1.xpose.msra.mxu0 0.0
    %271 = vmatprep.subr.mxu0 0.0
    %272 = vmatpush1.xpose.msra.mxu0 0.0
    %273 = vmatprep.subr.mxu0 0.0
    %274 = vmatpush1.xpose.msra.mxu0 0.0
    %275 = vmatprep.subr.mxu0 0.0
    %276 = vmatpush1.xpose.msra.mxu0 0.0
    %277 = vmatprep.subr.mxu0 0.0
    %278 = vmatpush1.xpose.msra.mxu0 0.0
    %279 = vmatprep.subr.mxu0 0.0
    %280 = vmatpush1.xpose.msra.mxu0 0.0
    %281 = vmatprep.subr.mxu0 0.0
    %282 = vmatpush1.xpose.msra.mxu0 0.0
    %283 = vmatprep.subr.mxu0 0.0
    %284 = vmatpush1.xpose.msra.mxu0 0.0
    %285 = vmatprep.subr.mxu0 0.0
    %286 = vmatpush1.xpose.msra.mxu0 0.0
    %287 = vmatprep.subr.mxu0 0.0
    %288 = vmatpush1.xpose.msra.mxu0 0.0
    %289 = vmatprep.subr.mxu0 0.0
    %290 = vmatpush1.xpose.msra.mxu0 0.0
    %291 = vmatprep.subr.mxu0 0.0
    %292 = vmatpush1.xpose.msra.mxu0 0.0
    %293 = vmatprep.subr.mxu0 0.0
    %294 = vmatpush1.xpose.msra.mxu0 0.0
    %295 = vmatprep.subr.mxu0 0.0
    %296 = vmatpush1.xpose.msra.mxu0 0.0
    %297 = vmatprep.subr.mxu0 0.0
    %298 = vmatpush1.xpose.msra.mxu0 0.0
    %299 = vmatprep.subr.mxu0 0.0
    %300 = vmatpush1.xpose.msra.mxu0 0.0
    %301 = vmatprep.mubr.f32.mxu0 0.0
    %302 = vmatmul.mubr.f32.gmra.mrb[0].mxu0 %v52
    %v303 = vpop.f32.mrb[0].mxu0
    %v304 = vadd.f32 %v229, %v303
    %v305 = vpop.f32.mrb[0].mxu0
    %306 = vmatprep.mubr.f32.mxu0 0.0
    %307 = vmatmul.mubr.f32.gmra.mrb[0].mxu0 %v55
    %v308 = vpop.f32.mrb[0].mxu0
    %v309 = vadd.f32 %v229, %v308
    %v310 = vpop.f32.mrb[0].mxu0
    %311 = vdwg.mxu0
    %v312 = vld [vmem:[%s4 + $0x10] sm:$0xff]
    %v313 = vld [vmem:[%s4 + $0x18] sm:$0xff]
    %314 = vrot.lane.b32.xlu0 %v145, 112
    %v315 = vpop.permute.xlu0 %314
    %v318 = vsel %vm50, %v312, 0
    %v321 = vsel %vm50, %v313, 0
    %323 = vmatprep.subr.mxu0 0.0
    %324 = vmatpush1.xpose.msra.mxu0 %v318
    %325 = vmatprep.subr.mxu0 0.0
    %326 = vmatpush1.xpose.msra.mxu0 %v321
    %327 = vmatprep.subr.mxu0 0.0
    %328 = vmatpush1.xpose.msra.mxu0 0.0
    %329 = vmatprep.subr.mxu0 0.0
    %330 = vmatpush1.xpose.msra.mxu0 0.0
    %331 = vmatprep.subr.mxu0 0.0
    %332 = vmatpush1.xpose.msra.mxu0 0.0
    %333 = vmatprep.subr.mxu0 0.0
    %334 = vmatpush1.xpose.msra.mxu0 0.0
    %335 = vmatprep.subr.mxu0 0.0
    %336 = vmatpush1.xpose.msra.mxu0 0.0
    %337 = vmatprep.subr.mxu0 0.0
    %338 = vmatpush1.xpose.msra.mxu0 0.0
    %339 = vmatprep.subr.mxu0 0.0
    %340 = vmatpush1.xpose.msra.mxu0 0.0
    %341 = vmatprep.subr.mxu0 0.0
    %342 = vmatpush1.xpose.msra.mxu0 0.0
    %343 = vmatprep.subr.mxu0 0.0
    %344 = vmatpush1.xpose.msra.mxu0 0.0
    %345 = vmatprep.subr.mxu0 0.0
    %346 = vmatpush1.xpose.msra.mxu0 0.0
    %347 = vmatprep.subr.mxu0 0.0
    %348 = vmatpush1.xpose.msra.mxu0 0.0
    %349 = vmatprep.subr.mxu0 0.0
    %350 = vmatpush1.xpose.msra.mxu0 0.0
    %351 = vmatprep.subr.mxu0 0.0
    %352 = vmatpush1.xpose.msra.mxu0 0.0
    %353 = vmatprep.subr.mxu0 0.0
    %354 = vmatpush1.xpose.msra.mxu0 0.0
    %355 = vmatprep.subr.mxu0 0.0
    %356 = vmatpush1.xpose.msra.mxu0 0.0
    %357 = vmatprep.subr.mxu0 0.0
    %358 = vmatpush1.xpose.msra.mxu0 0.0
    %359 = vmatprep.subr.mxu0 0.0
    %360 = vmatpush1.xpose.msra.mxu0 0.0
    %361 = vmatprep.subr.mxu0 0.0
    %362 = vmatpush1.xpose.msra.mxu0 0.0
    %363 = vmatprep.subr.mxu0 0.0
    %364 = vmatpush1.xpose.msra.mxu0 0.0
    %365 = vmatprep.subr.mxu0 0.0
    %366 = vmatpush1.xpose.msra.mxu0 0.0
    %367 = vmatprep.subr.mxu0 0.0
    %368 = vmatpush1.xpose.msra.mxu0 0.0
    %369 = vmatprep.subr.mxu0 0.0
    %370 = vmatpush1.xpose.msra.mxu0 0.0
    %371 = vmatprep.subr.mxu0 0.0
    %372 = vmatpush1.xpose.msra.mxu0 0.0
    %373 = vmatprep.subr.mxu0 0.0
    %374 = vmatpush1.xpose.msra.mxu0 0.0
    %375 = vmatprep.subr.mxu0 0.0
    %376 = vmatpush1.xpose.msra.mxu0 0.0
    %377 = vmatprep.subr.mxu0 0.0
    %378 = vmatpush1.xpose.msra.mxu0 0.0
    %379 = vmatprep.subr.mxu0 0.0
    %380 = vmatpush1.xpose.msra.mxu0 0.0
    %381 = vmatprep.subr.mxu0 0.0
    %382 = vmatpush1.xpose.msra.mxu0 0.0
    %383 = vmatprep.subr.mxu0 0.0
    %384 = vmatpush1.xpose.msra.mxu0 0.0
    %385 = vmatprep.subr.mxu0 0.0
    %386 = vmatpush1.xpose.msra.mxu0 0.0
    %387 = vmatprep.mubr.f32.mxu0 0.0
    %388 = vmatmul.mubr.f32.gmra.mrb[0].mxu0 %v148
    %v389 = vpop.f32.mrb[0].mxu0
    %v390 = vadd.f32 %v315, %v389
    %v391 = vpop.f32.mrb[0].mxu0
    %392 = vdwg.mxu0
    %v393 = vld [vmem:[%s7] sm:$0xff]
    %v394 = vld [vmem:[%s7 + $0x8] sm:$0xff]
    %v395 = vld [vmem:[%s8] sm:$0xff]
    %v396 = vld [vmem:[%s7 + $0x10] sm:$0xff]
    %v397 = vld [vmem:[%s7 + $0x18] sm:$0xff]
    %v398 = vld [vmem:[%s8 + $0x8] sm:$0xff]
    %vm399 = vcmask 130048
    %v401 = vsel %vm399, %v396, 0
    %v404 = vsel %vm399, %v397, 0
    %406 = vmatprep.subr.mxu0 0.0
    %407 = vmatpush1.msra.mxu0 %v304
    %408 = vmatprep.subr.mxu0 0.0
    %409 = vmatpush1.msra.mxu0 %v309
    %410 = vmatprep.subr.mxu0 0.0
    %411 = vmatpush1.msra.mxu0 0.0
    %412 = vmatprep.subr.mxu0 0.0
    %413 = vmatpush1.msra.mxu0 0.0
    %414 = vmatprep.subr.mxu0 0.0
    %415 = vmatpush1.msra.mxu0 0.0
    %416 = vmatprep.subr.mxu0 0.0
    %417 = vmatpush1.msra.mxu0 0.0
    %418 = vmatprep.subr.mxu0 0.0
    %419 = vmatpush1.msra.mxu0 0.0
    %420 = vmatprep.subr.mxu0 0.0
    %421 = vmatpush1.msra.mxu0 0.0
    %422 = vmatprep.subr.mxu0 0.0
    %423 = vmatpush1.msra.mxu0 0.0
    %424 = vmatprep.subr.mxu0 0.0
    %425 = vmatpush1.msra.mxu0 0.0
    %426 = vmatprep.subr.mxu0 0.0
    %427 = vmatpush1.msra.mxu0 0.0
    %428 = vmatprep.subr.mxu0 0.0
    %429 = vmatpush1.msra.mxu0 0.0
    %430 = vmatprep.subr.mxu0 0.0
    %431 = vmatpush1.msra.mxu0 0.0
    %432 = vmatprep.subr.mxu0 0.0
    %433 = vmatpush1.msra.mxu0 0.0
    %434 = vmatprep.subr.mxu0 0.0
    %435 = vmatpush1.msra.mxu0 0.0
    %436 = vmatprep.subr.mxu0 0.0
    %437 = vmatpush1.msra.mxu0 0.0
    %438 = vmatprep.subr.mxu0 0.0
    %439 = vmatpush1.msra.mxu0 0.0
    %440 = vmatprep.subr.mxu0 0.0
    %441 = vmatpush1.msra.mxu0 0.0
    %442 = vmatprep.subr.mxu0 0.0
    %443 = vmatpush1.msra.mxu0 0.0
    %444 = vmatprep.subr.mxu0 0.0
    %445 = vmatpush1.msra.mxu0 0.0
    %446 = vmatprep.subr.mxu0 0.0
    %447 = vmatpush1.msra.mxu0 0.0
    %448 = vmatprep.subr.mxu0 0.0
    %449 = vmatpush1.msra.mxu0 0.0
    %450 = vmatprep.subr.mxu0 0.0
    %451 = vmatpush1.msra.mxu0 0.0
    %452 = vmatprep.subr.mxu0 0.0
    %453 = vmatpush1.msra.mxu0 0.0
    %454 = vmatprep.subr.mxu0 0.0
    %455 = vmatpush1.msra.mxu0 0.0
    %456 = vmatprep.subr.mxu0 0.0
    %457 = vmatpush1.msra.mxu0 0.0
    %458 = vmatprep.subr.mxu0 0.0
    %459 = vmatpush1.msra.mxu0 0.0
    %460 = vmatprep.subr.mxu0 0.0
    %461 = vmatpush1.msra.mxu0 0.0
    %462 = vmatprep.subr.mxu0 0.0
    %463 = vmatpush1.msra.mxu0 0.0
    %464 = vmatprep.subr.mxu0 0.0
    %465 = vmatpush1.msra.mxu0 0.0
    %466 = vmatprep.subr.mxu0 0.0
    %467 = vmatpush1.msra.mxu0 0.0
    %468 = vmatprep.subr.mxu0 0.0
    %469 = vmatpush1.msra.mxu0 0.0
    %470 = vmatprep.mubr.f32.mxu0 0.0
    %471 = vmatmul.mubr.f32.gmra.mrb[0].mxu0 %v401
    %v472 = vpop.f32.mrb[0].mxu0
    %v473 = vadd.f32 0.0, %v472
    %v474 = vpop.f32.mrb[0].mxu0
    %475 = vmatprep.mubr.f32.mxu0 0.0
    %476 = vmatmul.mubr.f32.gmra.mrb[0].mxu0 %v404
    %v477 = vpop.f32.mrb[0].mxu0
    %v478 = vadd.f32 0.0, %v477
    %v479 = vpop.f32.mrb[0].mxu0
    %480 = vdwg.mxu0
    %v482 = vsel %vm399, %v393, 0
    %v485 = vsel %vm399, %v394, 0
    %487 = vmatprep.subr.mxu0 0.0
    %488 = vmatpush1.msra.mxu0 %v130
    %489 = vmatprep.subr.mxu0 0.0
    %490 = vmatpush1.msra.mxu0 %v135
    %491 = vmatprep.subr.mxu0 0.0
    %492 = vmatpush1.msra.mxu0 0.0
    %493 = vmatprep.subr.mxu0 0.0
    %494 = vmatpush1.msra.mxu0 0.0
    %495 = vmatprep.subr.mxu0 0.0
    %496 = vmatpush1.msra.mxu0 0.0
    %497 = vmatprep.subr.mxu0 0.0
    %498 = vmatpush1.msra.mxu0 0.0
    %499 = vmatprep.subr.mxu0 0.0
    %500 = vmatpush1.msra.mxu0 0.0
    %501 = vmatprep.subr.mxu0 0.0
    %502 = vmatpush1.msra.mxu0 0.0
    %503 = vmatprep.subr.mxu0 0.0
    %504 = vmatpush1.msra.mxu0 0.0
    %505 = vmatprep.subr.mxu0 0.0
    %506 = vmatpush1.msra.mxu0 0.0
    %507 = vmatprep.subr.mxu0 0.0
    %508 = vmatpush1.msra.mxu0 0.0
    %509 = vmatprep.subr.mxu0 0.0
    %510 = vmatpush1.msra.mxu0 0.0
    %511 = vmatprep.subr.mxu0 0.0
    %512 = vmatpush1.msra.mxu0 0.0
    %513 = vmatprep.subr.mxu0 0.0
    %514 = vmatpush1.msra.mxu0 0.0
    %515 = vmatprep.subr.mxu0 0.0
    %516 = vmatpush1.msra.mxu0 0.0
    %517 = vmatprep.subr.mxu0 0.0
    %518 = vmatpush1.msra.mxu0 0.0
    %519 = vmatprep.subr.mxu0 0.0
    %520 = vmatpush1.msra.mxu0 0.0
    %521 = vmatprep.subr.mxu0 0.0
    %522 = vmatpush1.msra.mxu0 0.0
    %523 = vmatprep.subr.mxu0 0.0
    %524 = vmatpush1.msra.mxu0 0.0
    %525 = vmatprep.subr.mxu0 0.0
    %526 = vmatpush1.msra.mxu0 0.0
    %527 = vmatprep.subr.mxu0 0.0
    %528 = vmatpush1.msra.mxu0 0.0
    %529 = vmatprep.subr.mxu0 0.0
    %530 = vmatpush1.msra.mxu0 0.0
    %531 = vmatprep.subr.mxu0 0.0
    %532 = vmatpush1.msra.mxu0 0.0
    %533 = vmatprep.subr.mxu0 0.0
    %534 = vmatpush1.msra.mxu0 0.0
    %535 = vmatprep.subr.mxu0 0.0
    %536 = vmatpush1.msra.mxu0 0.0
    %537 = vmatprep.subr.mxu0 0.0
    %538 = vmatpush1.msra.mxu0 0.0
    %539 = vmatprep.subr.mxu0 0.0
    %540 = vmatpush1.msra.mxu0 0.0
    %541 = vmatprep.subr.mxu0 0.0
    %542 = vmatpush1.msra.mxu0 0.0
    %543 = vmatprep.subr.mxu0 0.0
    %544 = vmatpush1.msra.mxu0 0.0
    %545 = vmatprep.subr.mxu0 0.0
    %546 = vmatpush1.msra.mxu0 0.0
    %547 = vmatprep.subr.mxu0 0.0
    %548 = vmatpush1.msra.mxu0 0.0
    %549 = vmatprep.subr.mxu0 0.0
    %550 = vmatpush1.msra.mxu0 0.0
    %551 = vmatprep.mubr.f32.mxu0 0.0
    %552 = vmatmul.mubr.f32.gmra.mrb[0].mxu0 %v482
    %v553 = vpop.f32.mrb[0].mxu0
    %v554 = vadd.f32 %v473, %v553
    %v555 = vpop.f32.mrb[0].mxu0
    %556 = vmatprep.mubr.f32.mxu0 0.0
    %557 = vmatmul.mubr.f32.gmra.mrb[0].mxu0 %v485
    %v558 = vpop.f32.mrb[0].mxu0
    %v559 = vadd.f32 %v478, %v558
    %v560 = vpop.f32.mrb[0].mxu0
    %561 = vdwg.mxu0
    %vm562 = vcmask 64512
    %v564 = vsel %vm562, %v398, 0
    %566 = vmatprep.subr.mxu0 0.0
    %567 = vmatpush1.msra.mxu0 %v390
    %568 = vmatprep.subr.mxu0 0.0
    %569 = vmatpush1.msra.mxu0 0.0
    %570 = vmatprep.subr.mxu0 0.0
    %571 = vmatpush1.msra.mxu0 0.0
    %572 = vmatprep.subr.mxu0 0.0
    %573 = vmatpush1.msra.mxu0 0.0
    %574 = vmatprep.subr.mxu0 0.0
    %575 = vmatpush1.msra.mxu0 0.0
    %576 = vmatprep.subr.mxu0 0.0
    %577 = vmatpush1.msra.mxu0 0.0
    %578 = vmatprep.subr.mxu0 0.0
    %579 = vmatpush1.msra.mxu0 0.0
    %580 = vmatprep.subr.mxu0 0.0
    %581 = vmatpush1.msra.mxu0 0.0
    %582 = vmatprep.subr.mxu0 0.0
    %583 = vmatpush1.msra.mxu0 0.0
    %584 = vmatprep.subr.mxu0 0.0
    %585 = vmatpush1.msra.mxu0 0.0
    %586 = vmatprep.subr.mxu0 0.0
    %587 = vmatpush1.msra.mxu0 0.0
    %588 = vmatprep.subr.mxu0 0.0
    %589 = vmatpush1.msra.mxu0 0.0
    %590 = vmatprep.subr.mxu0 0.0
    %591 = vmatpush1.msra.mxu0 0.0
    %592 = vmatprep.subr.mxu0 0.0
    %593 = vmatpush1.msra.mxu0 0.0
    %594 = vmatprep.subr.mxu0 0.0
    %595 = vmatpush1.msra.mxu0 0.0
    %596 = vmatprep.subr.mxu0 0.0
    %597 = vmatpush1.msra.mxu0 0.0
    %598 = vmatprep.subr.mxu0 0.0
    %599 = vmatpush1.msra.mxu0 0.0
    %600 = vmatprep.subr.mxu0 0.0
    %601 = vmatpush1.msra.mxu0 0.0
    %602 = vmatprep.subr.mxu0 0.0
    %603 = vmatpush1.msra.mxu0 0.0
    %604 = vmatprep.subr.mxu0 0.0
    %605 = vmatpush1.msra.mxu0 0.0
    %606 = vmatprep.subr.mxu0 0.0
    %607 = vmatpush1.msra.mxu0 0.0
    %608 = vmatprep.subr.mxu0 0.0
    %609 = vmatpush1.msra.mxu0 0.0
    %610 = vmatprep.subr.mxu0 0.0
    %611 = vmatpush1.msra.mxu0 0.0
    %612 = vmatprep.subr.mxu0 0.0
    %613 = vmatpush1.msra.mxu0 0.0
    %614 = vmatprep.subr.mxu0 0.0
    %615 = vmatpush1.msra.mxu0 0.0
    %616 = vmatprep.subr.mxu0 0.0
    %617 = vmatpush1.msra.mxu0 0.0
    %618 = vmatprep.subr.mxu0 0.0
    %619 = vmatpush1.msra.mxu0 0.0
    %620 = vmatprep.subr.mxu0 0.0
    %621 = vmatpush1.msra.mxu0 0.0
    %622 = vmatprep.subr.mxu0 0.0
    %623 = vmatpush1.msra.mxu0 0.0
    %624 = vmatprep.subr.mxu0 0.0
    %625 = vmatpush1.msra.mxu0 0.0
    %626 = vmatprep.subr.mxu0 0.0
    %627 = vmatpush1.msra.mxu0 0.0
    %628 = vmatprep.subr.mxu0 0.0
    %629 = vmatpush1.msra.mxu0 0.0
    %630 = vmatprep.mubr.f32.mxu0 0.0
    %631 = vmatmul.mubr.f32.gmra.mrb[0].mxu0 %v564
    %v632 = vpop.f32.mrb[0].mxu0
    %v633 = vadd.f32 0.0, %v632
    %v634 = vpop.f32.mrb[0].mxu0
    %635 = vdwg.mxu0
    %v637 = vsel %vm562, %v395, 0
    %639 = vmatprep.subr.mxu0 0.0
    %640 = vmatpush1.msra.mxu0 %v223
    %641 = vmatprep.subr.mxu0 0.0
    %642 = vmatpush1.msra.mxu0 0.0
    %643 = vmatprep.subr.mxu0 0.0
    %644 = vmatpush1.msra.mxu0 0.0
    %645 = vmatprep.subr.mxu0 0.0
    %646 = vmatpush1.msra.mxu0 0.0
    %647 = vmatprep.subr.mxu0 0.0
    %648 = vmatpush1.msra.mxu0 0.0
    %649 = vmatprep.subr.mxu0 0.0
    %650 = vmatpush1.msra.mxu0 0.0
    %651 = vmatprep.subr.mxu0 0.0
    %652 = vmatpush1.msra.mxu0 0.0
    %653 = vmatprep.subr.mxu0 0.0
    %654 = vmatpush1.msra.mxu0 0.0
    %655 = vmatprep.subr.mxu0 0.0
    %656 = vmatpush1.msra.mxu0 0.0
    %657 = vmatprep.subr.mxu0 0.0
    %658 = vmatpush1.msra.mxu0 0.0
    %659 = vmatprep.subr.mxu0 0.0
    %660 = vmatpush1.msra.mxu0 0.0
    %661 = vmatprep.subr.mxu0 0.0
    %662 = vmatpush1.msra.mxu0 0.0
    %663 = vmatprep.subr.mxu0 0.0
    %664 = vmatpush1.msra.mxu0 0.0
    %665 = vmatprep.subr.mxu0 0.0
    %666 = vmatpush1.msra.mxu0 0.0
    %667 = vmatprep.subr.mxu0 0.0
    %668 = vmatpush1.msra.mxu0 0.0
    %669 = vmatprep.subr.mxu0 0.0
    %670 = vmatpush1.msra.mxu0 0.0
    %671 = vmatprep.subr.mxu0 0.0
    %672 = vmatpush1.msra.mxu0 0.0
    %673 = vmatprep.subr.mxu0 0.0
    %674 = vmatpush1.msra.mxu0 0.0
    %675 = vmatprep.subr.mxu0 0.0
    %676 = vmatpush1.msra.mxu0 0.0
    %677 = vmatprep.subr.mxu0 0.0
    %678 = vmatpush1.msra.mxu0 0.0
    %679 = vmatprep.subr.mxu0 0.0
    %680 = vmatpush1.msra.mxu0 0.0
    %681 = vmatprep.subr.mxu0 0.0
    %682 = vmatpush1.msra.mxu0 0.0
    %683 = vmatprep.subr.mxu0 0.0
    %684 = vmatpush1.msra.mxu0 0.0
    %685 = vmatprep.subr.mxu0 0.0
    %686 = vmatpush1.msra.mxu0 0.0
    %687 = vmatprep.subr.mxu0 0.0
    %688 = vmatpush1.msra.mxu0 0.0
    %689 = vmatprep.subr.mxu0 0.0
    %690 = vmatpush1.msra.mxu0 0.0
    %691 = vmatprep.subr.mxu0 0.0
    %692 = vmatpush1.msra.mxu0 0.0
    %693 = vmatprep.subr.mxu0 0.0
    %694 = vmatpush1.msra.mxu0 0.0
    %695 = vmatprep.subr.mxu0 0.0
    %696 = vmatpush1.msra.mxu0 0.0
    %697 = vmatprep.subr.mxu0 0.0
    %698 = vmatpush1.msra.mxu0 0.0
    %699 = vmatprep.subr.mxu0 0.0
    %700 = vmatpush1.msra.mxu0 0.0
    %701 = vmatprep.subr.mxu0 0.0
    %702 = vmatpush1.msra.mxu0 0.0
    %703 = vmatprep.mubr.f32.mxu0 0.0
    %704 = vmatmul.mubr.f32.gmra.mrb[0].mxu0 %v637
    %v705 = vpop.f32.mrb[0].mxu0
    %v706 = vadd.f32 %v633, %v705
    %v707 = vpop.f32.mrb[0].mxu0
    %708 = vdwg.mxu0
    %v709 = vadd.f32 %v706, %v40
    %v710 = vadd.f32 %v554, 0.0
    %v711 = vadd.f32 %v559, 0.0
    %v712 = vadd.f32 %v709, 0.0
    %v714 = vsel %vm399, %v554, 0
    %v717 = vsel %vm399, %v559, 0
    %v720 = vsel %vm399, %v709, 0
    %722 = vmatprep.subr.mxu0 0.0
    %723 = vmatpush1.xpose.msra.mxu0 %v720
    %724 = vmatprep.subr.mxu0 0.0
    %725 = vmatpush1.xpose.msra.mxu0 0.0
    %726 = vmatprep.subr.mxu0 0.0
    %727 = vmatpush1.xpose.msra.mxu0 0.0
    %728 = vmatprep.subr.mxu0 0.0
    %729 = vmatpush1.xpose.msra.mxu0 0.0
    %730 = vmatprep.subr.mxu0 0.0
    %731 = vmatpush1.xpose.msra.mxu0 0.0
    %732 = vmatprep.subr.mxu0 0.0
    %733 = vmatpush1.xpose.msra.mxu0 0.0
    %734 = vmatprep.subr.mxu0 0.0
    %735 = vmatpush1.xpose.msra.mxu0 0.0
    %736 = vmatprep.subr.mxu0 0.0
    %737 = vmatpush1.xpose.msra.mxu0 0.0
    %738 = vmatprep.subr.mxu0 0.0
    %739 = vmatpush1.xpose.msra.mxu0 0.0
    %740 = vmatprep.subr.mxu0 0.0
    %741 = vmatpush1.xpose.msra.mxu0 0.0
    %742 = vmatprep.subr.mxu0 0.0
    %743 = vmatpush1.xpose.msra.mxu0 0.0
    %744 = vmatprep.subr.mxu0 0.0
    %745 = vmatpush1.xpose.msra.mxu0 0.0
    %746 = vmatprep.subr.mxu0 0.0
    %747 = vmatpush1.xpose.msra.mxu0 0.0
    %748 = vmatprep.subr.mxu0 0.0
    %749 = vmatpush1.xpose.msra.mxu0 0.0
    %750 = vmatprep.subr.mxu0 0.0
    %751 = vmatpush1.xpose.msra.mxu0 0.0
    %752 = vmatprep.subr.mxu0 0.0
    %753 = vmatpush1.xpose.msra.mxu0 0.0
    %754 = vmatprep.subr.mxu0 0.0
    %755 = vmatpush1.xpose.msra.mxu0 0.0
    %756 = vmatprep.subr.mxu0 0.0
    %757 = vmatpush1.xpose.msra.mxu0 0.0
    %758 = vmatprep.subr.mxu0 0.0
    %759 = vmatpush1.xpose.msra.mxu0 0.0
    %760 = vmatprep.subr.mxu0 0.0
    %761 = vmatpush1.xpose.msra.mxu0 0.0
    %762 = vmatprep.subr.mxu0 0.0
    %763 = vmatpush1.xpose.msra.mxu0 0.0
    %764 = vmatprep.subr.mxu0 0.0
    %765 = vmatpush1.xpose.msra.mxu0 0.0
    %766 = vmatprep.subr.mxu0 0.0
    %767 = vmatpush1.xpose.msra.mxu0 0.0
    %768 = vmatprep.subr.mxu0 0.0
    %769 = vmatpush1.xpose.msra.mxu0 0.0
    %770 = vmatprep.subr.mxu0 0.0
    %771 = vmatpush1.xpose.msra.mxu0 0.0
    %772 = vmatprep.subr.mxu0 0.0
    %773 = vmatpush1.xpose.msra.mxu0 0.0
    %774 = vmatprep.subr.mxu0 0.0
    %775 = vmatpush1.xpose.msra.mxu0 0.0
    %776 = vmatprep.subr.mxu0 0.0
    %777 = vmatpush1.xpose.msra.mxu0 0.0
    %778 = vmatprep.subr.mxu0 0.0
    %779 = vmatpush1.xpose.msra.mxu0 0.0
    %780 = vmatprep.subr.mxu0 0.0
    %781 = vmatpush1.xpose.msra.mxu0 0.0
    %782 = vmatprep.subr.mxu0 0.0
    %783 = vmatpush1.xpose.msra.mxu0 0.0
    %784 = vmatprep.subr.mxu0 0.0
    %785 = vmatpush1.xpose.msra.mxu0 0.0
    %786 = vmatprep.mubr.f32.mxu0 0.0
    %787 = vmatmul.mubr.f32.gmra.mrb[0].mxu0 %v714
    %v788 = vpop.f32.mrb[0].mxu0
    %v789 = vadd.f32 0.0, %v788
    %v790 = vpop.f32.mrb[0].mxu0
    %791 = vmatprep.mubr.f32.mxu0 0.0
    %792 = vmatmul.mubr.f32.gmra.mrb[0].mxu0 %v717
    %v793 = vpop.f32.mrb[0].mxu0
    %v794 = vadd.f32 0.0, %v793
    %v795 = vpop.f32.mrb[0].mxu0
    %796 = vdwg.mxu0
    %vm797 = vcmp.ge.f32.partialorder %v789, 0.0
    %vm798 = vcmp.ge.f32.partialorder %v794, 0.0
    %v799 = vmul.f32 %v789, 0.2
    %v800 = vmul.f32 %v794, 0.2
    %v801 = vsel %vm797, %v789, %v799
    %v802 = vsel %vm798, %v794, %v800
    %v803 = vadd.f32 %v801, 0.0
    %v804 = vadd.f32 %v802, 0.0
    %v805 = vld [vmem:[%s7 + $0x20] sm:$0xff]
    %v806 = vld [vmem:[%s7 + $0x28] sm:$0xff]
    %v807 = vld [vmem:[%s8 + $0x10] sm:$0xff]
    %v808 = vld [vmem:[%s7 + $0x30] sm:$0xff]
    %v809 = vld [vmem:[%s7 + $0x38] sm:$0xff]
    %v810 = vld [vmem:[%s8 + $0x18] sm:$0xff]
    %v812 = vsel %vm399, %v808, 0
    %v815 = vsel %vm399, %v809, 0
    %817 = vmatprep.subr.mxu0 0.0
    %818 = vmatpush1.msra.mxu0 %v304
    %819 = vmatprep.subr.mxu0 0.0
    %820 = vmatpush1.msra.mxu0 %v309
    %821 = vmatprep.subr.mxu0 0.0
    %822 = vmatpush1.msra.mxu0 0.0
    %823 = vmatprep.subr.mxu0 0.0
    %824 = vmatpush1.msra.mxu0 0.0
    %825 = vmatprep.subr.mxu0 0.0
    %826 = vmatpush1.msra.mxu0 0.0
    %827 = vmatprep.subr.mxu0 0.0
    %828 = vmatpush1.msra.mxu0 0.0
    %829 = vmatprep.subr.mxu0 0.0
    %830 = vmatpush1.msra.mxu0 0.0
    %831 = vmatprep.subr.mxu0 0.0
    %832 = vmatpush1.msra.mxu0 0.0
    %833 = vmatprep.subr.mxu0 0.0
    %834 = vmatpush1.msra.mxu0 0.0
    %835 = vmatprep.subr.mxu0 0.0
    %836 = vmatpush1.msra.mxu0 0.0
    %837 = vmatprep.subr.mxu0 0.0
    %838 = vmatpush1.msra.mxu0 0.0
    %839 = vmatprep.subr.mxu0 0.0
    %840 = vmatpush1.msra.mxu0 0.0
    %841 = vmatprep.subr.mxu0 0.0
    %842 = vmatpush1.msra.mxu0 0.0
    %843 = vmatprep.subr.mxu0 0.0
    %844 = vmatpush1.msra.mxu0 0.0
    %845 = vmatprep.subr.mxu0 0.0
    %846 = vmatpush1.msra.mxu0 0.0
    %847 = vmatprep.subr.mxu0 0.0
    %848 = vmatpush1.msra.mxu0 0.0
    %849 = vmatprep.subr.mxu0 0.0
    %850 = vmatpush1.msra.mxu0 0.0
    %851 = vmatprep.subr.mxu0 0.0
    %852 = vmatpush1.msra.mxu0 0.0
    %853 = vmatprep.subr.mxu0 0.0
    %854 = vmatpush1.msra.mxu0 0.0
    %855 = vmatprep.subr.mxu0 0.0
    %856 = vmatpush1.msra.mxu0 0.0
    %857 = vmatprep.subr.mxu0 0.0
    %858 = vmatpush1.msra.mxu0 0.0
    %859 = vmatprep.subr.mxu0 0.0
    %860 = vmatpush1.msra.mxu0 0.0
    %861 = vmatprep.subr.mxu0 0.0
    %862 = vmatpush1.msra.mxu0 0.0
    %863 = vmatprep.subr.mxu0 0.0
    %864 = vmatpush1.msra.mxu0 0.0
    %865 = vmatprep.subr.mxu0 0.0
    %866 = vmatpush1.msra.mxu0 0.0
    %867 = vmatprep.subr.mxu0 0.0
    %868 = vmatpush1.msra.mxu0 0.0
    %869 = vmatprep.subr.mxu0 0.0
    %870 = vmatpush1.msra.mxu0 0.0
    %871 = vmatprep.subr.mxu0 0.0
    %872 = vmatpush1.msra.mxu0 0.0
    %873 = vmatprep.subr.mxu0 0.0
    %874 = vmatpush1.msra.mxu0 0.0
    %875 = vmatprep.subr.mxu0 0.0
    %876 = vmatpush1.msra.mxu0 0.0
    %877 = vmatprep.subr.mxu0 0.0
    %878 = vmatpush1.msra.mxu0 0.0
    %879 = vmatprep.subr.mxu0 0.0
    %880 = vmatpush1.msra.mxu0 0.0
    %881 = vmatprep.mubr.f32.mxu0 0.0
    %882 = vmatmul.mubr.f32.gmra.mrb[0].mxu0 %v812
    %v883 = vpop.f32.mrb[0].mxu0
    %v884 = vadd.f32 0.0, %v883
    %v885 = vpop.f32.mrb[0].mxu0
    %886 = vmatprep.mubr.f32.mxu0 0.0
    %887 = vmatmul.mubr.f32.gmra.mrb[0].mxu0 %v815
    %v888 = vpop.f32.mrb[0].mxu0
    %v889 = vadd.f32 0.0, %v888
    %v890 = vpop.f32.mrb[0].mxu0
    %891 = vdwg.mxu0
    %v893 = vsel %vm399, %v805, 0
    %v896 = vsel %vm399, %v806, 0
    %898 = vmatprep.subr.mxu0 0.0
    %899 = vmatpush1.msra.mxu0 %v130
    %900 = vmatprep.subr.mxu0 0.0
    %901 = vmatpush1.msra.mxu0 %v135
    %902 = vmatprep.subr.mxu0 0.0
    %903 = vmatpush1.msra.mxu0 0.0
    %904 = vmatprep.subr.mxu0 0.0
    %905 = vmatpush1.msra.mxu0 0.0
    %906 = vmatprep.subr.mxu0 0.0
    %907 = vmatpush1.msra.mxu0 0.0
    %908 = vmatprep.subr.mxu0 0.0
    %909 = vmatpush1.msra.mxu0 0.0
    %910 = vmatprep.subr.mxu0 0.0
    %911 = vmatpush1.msra.mxu0 0.0
    %912 = vmatprep.subr.mxu0 0.0
    %913 = vmatpush1.msra.mxu0 0.0
    %914 = vmatprep.subr.mxu0 0.0
    %915 = vmatpush1.msra.mxu0 0.0
    %916 = vmatprep.subr.mxu0 0.0
    %917 = vmatpush1.msra.mxu0 0.0
    %918 = vmatprep.subr.mxu0 0.0
    %919 = vmatpush1.msra.mxu0 0.0
    %920 = vmatprep.subr.mxu0 0.0
    %921 = vmatpush1.msra.mxu0 0.0
    %922 = vmatprep.subr.mxu0 0.0
    %923 = vmatpush1.msra.mxu0 0.0
    %924 = vmatprep.subr.mxu0 0.0
    %925 = vmatpush1.msra.mxu0 0.0
    %926 = vmatprep.subr.mxu0 0.0
    %927 = vmatpush1.msra.mxu0 0.0
    %928 = vmatprep.subr.mxu0 0.0
    %929 = vmatpush1.msra.mxu0 0.0
    %930 = vmatprep.subr.mxu0 0.0
    %931 = vmatpush1.msra.mxu0 0.0
    %932 = vmatprep.subr.mxu0 0.0
    %933 = vmatpush1.msra.mxu0 0.0
    %934 = vmatprep.subr.mxu0 0.0
    %935 = vmatpush1.msra.mxu0 0.0
    %936 = vmatprep.subr.mxu0 0.0
    %937 = vmatpush1.msra.mxu0 0.0
    %938 = vmatprep.subr.mxu0 0.0
    %939 = vmatpush1.msra.mxu0 0.0
    %940 = vmatprep.subr.mxu0 0.0
    %941 = vmatpush1.msra.mxu0 0.0
    %942 = vmatprep.subr.mxu0 0.0
    %943 = vmatpush1.msra.mxu0 0.0
    %944 = vmatprep.subr.mxu0 0.0
    %945 = vmatpush1.msra.mxu0 0.0
    %946 = vmatprep.subr.mxu0 0.0
    %947 = vmatpush1.msra.mxu0 0.0
    %948 = vmatprep.subr.mxu0 0.0
    %949 = vmatpush1.msra.mxu0 0.0
    %950 = vmatprep.subr.mxu0 0.0
    %951 = vmatpush1.msra.mxu0 0.0
    %952 = vmatprep.subr.mxu0 0.0
    %953 = vmatpush1.msra.mxu0 0.0
    %954 = vmatprep.subr.mxu0 0.0
    %955 = vmatpush1.msra.mxu0 0.0
    %956 = vmatprep.subr.mxu0 0.0
    %957 = vmatpush1.msra.mxu0 0.0
    %958 = vmatprep.subr.mxu0 0.0
    %959 = vmatpush1.msra.mxu0 0.0
    %960 = vmatprep.subr.mxu0 0.0
    %961 = vmatpush1.msra.mxu0 0.0
    %962 = vmatprep.mubr.f32.mxu0 0.0
    %963 = vmatmul.mubr.f32.gmra.mrb[0].mxu0 %v893
    %v964 = vpop.f32.mrb[0].mxu0
    %v965 = vadd.f32 %v884, %v964
    %v966 = vpop.f32.mrb[0].mxu0
    %967 = vmatprep.mubr.f32.mxu0 0.0
    %968 = vmatmul.mubr.f32.gmra.mrb[0].mxu0 %v896
    %v969 = vpop.f32.mrb[0].mxu0
    %v970 = vadd.f32 %v889, %v969
    %v971 = vpop.f32.mrb[0].mxu0
    %972 = vdwg.mxu0
    %v974 = vsel %vm562, %v810, 0
    %976 = vmatprep.subr.mxu0 0.0
    %977 = vmatpush1.msra.mxu0 %v390
    %978 = vmatprep.subr.mxu0 0.0
    %979 = vmatpush1.msra.mxu0 0.0
    %980 = vmatprep.subr.mxu0 0.0
    %981 = vmatpush1.msra.mxu0 0.0
    %982 = vmatprep.subr.mxu0 0.0
    %983 = vmatpush1.msra.mxu0 0.0
    %984 = vmatprep.subr.mxu0 0.0
    %985 = vmatpush1.msra.mxu0 0.0
    %986 = vmatprep.subr.mxu0 0.0
    %987 = vmatpush1.msra.mxu0 0.0
    %988 = vmatprep.subr.mxu0 0.0
    %989 = vmatpush1.msra.mxu0 0.0
    %990 = vmatprep.subr.mxu0 0.0
    %991 = vmatpush1.msra.mxu0 0.0
    %992 = vmatprep.subr.mxu0 0.0
    %993 = vmatpush1.msra.mxu0 0.0
    %994 = vmatprep.subr.mxu0 0.0
    %995 = vmatpush1.msra.mxu0 0.0
    %996 = vmatprep.subr.mxu0 0.0
    %997 = vmatpush1.msra.mxu0 0.0
    %998 = vmatprep.subr.mxu0 0.0
    %999 = vmatpush1.msra.mxu0 0.0
    %1000 = vmatprep.subr.mxu0 0.0
    %1001 = vmatpush1.msra.mxu0 0.0
    %1002 = vmatprep.subr.mxu0 0.0
    %1003 = vmatpush1.msra.mxu0 0.0
    %1004 = vmatprep.subr.mxu0 0.0
    %1005 = vmatpush1.msra.mxu0 0.0
    %1006 = vmatprep.subr.mxu0 0.0
    %1007 = vmatpush1.msra.mxu0 0.0
    %1008 = vmatprep.subr.mxu0 0.0
    %1009 = vmatpush1.msra.mxu0 0.0
    %1010 = vmatprep.subr.mxu0 0.0
    %1011 = vmatpush1.msra.mxu0 0.0
    %1012 = vmatprep.subr.mxu0 0.0
    %1013 = vmatpush1.msra.mxu0 0.0
    %1014 = vmatprep.subr.mxu0 0.0
    %1015 = vmatpush1.msra.mxu0 0.0
    %1016 = vmatprep.subr.mxu0 0.0
    %1017 = vmatpush1.msra.mxu0 0.0
    %1018 = vmatprep.subr.mxu0 0.0
    %1019 = vmatpush1.msra.mxu0 0.0
    %1020 = vmatprep.subr.mxu0 0.0
    %1021 = vmatpush1.msra.mxu0 0.0
    %1022 = vmatprep.subr.mxu0 0.0
    %1023 = vmatpush1.msra.mxu0 0.0
    %1024 = vmatprep.subr.mxu0 0.0
    %1025 = vmatpush1.msra.mxu0 0.0
    %1026 = vmatprep.subr.mxu0 0.0
    %1027 = vmatpush1.msra.mxu0 0.0
    %1028 = vmatprep.subr.mxu0 0.0
    %1029 = vmatpush1.msra.mxu0 0.0
    %1030 = vmatprep.subr.mxu0 0.0
    %1031 = vmatpush1.msra.mxu0 0.0
    %1032 = vmatprep.subr.mxu0 0.0
    %1033 = vmatpush1.msra.mxu0 0.0
    %1034 = vmatprep.subr.mxu0 0.0
    %1035 = vmatpush1.msra.mxu0 0.0
    %1036 = vmatprep.subr.mxu0 0.0
    %1037 = vmatpush1.msra.mxu0 0.0
    %1038 = vmatprep.subr.mxu0 0.0
    %1039 = vmatpush1.msra.mxu0 0.0
    %1040 = vmatprep.mubr.f32.mxu0 0.0
    %1041 = vmatmul.mubr.f32.gmra.mrb[0].mxu0 %v974
    %v1042 = vpop.f32.mrb[0].mxu0
    %v1043 = vadd.f32 0.0, %v1042
    %v1044 = vpop.f32.mrb[0].mxu0
    %1045 = vdwg.mxu0
    %v1047 = vsel %vm562, %v807, 0
    %1049 = vmatprep.subr.mxu0 0.0
    %1050 = vmatpush1.msra.mxu0 %v223
    %1051 = vmatprep.subr.mxu0 0.0
    %1052 = vmatpush1.msra.mxu0 0.0
    %1053 = vmatprep.subr.mxu0 0.0
    %1054 = vmatpush1.msra.mxu0 0.0
    %1055 = vmatprep.subr.mxu0 0.0
    %1056 = vmatpush1.msra.mxu0 0.0
    %1057 = vmatprep.subr.mxu0 0.0
    %1058 = vmatpush1.msra.mxu0 0.0
    %1059 = vmatprep.subr.mxu0 0.0
    %1060 = vmatpush1.msra.mxu0 0.0
    %1061 = vmatprep.subr.mxu0 0.0
    %1062 = vmatpush1.msra.mxu0 0.0
    %1063 = vmatprep.subr.mxu0 0.0
    %1064 = vmatpush1.msra.mxu0 0.0
    %1065 = vmatprep.subr.mxu0 0.0
    %1066 = vmatpush1.msra.mxu0 0.0
    %1067 = vmatprep.subr.mxu0 0.0
    %1068 = vmatpush1.msra.mxu0 0.0
    %1069 = vmatprep.subr.mxu0 0.0
    %1070 = vmatpush1.msra.mxu0 0.0
    %1071 = vmatprep.subr.mxu0 0.0
    %1072 = vmatpush1.msra.mxu0 0.0
    %1073 = vmatprep.subr.mxu0 0.0
    %1074 = vmatpush1.msra.mxu0 0.0
    %1075 = vmatprep.subr.mxu0 0.0
    %1076 = vmatpush1.msra.mxu0 0.0
    %1077 = vmatprep.subr.mxu0 0.0
    %1078 = vmatpush1.msra.mxu0 0.0
    %1079 = vmatprep.subr.mxu0 0.0
    %1080 = vmatpush1.msra.mxu0 0.0
    %1081 = vmatprep.subr.mxu0 0.0
    %1082 = vmatpush1.msra.mxu0 0.0
    %1083 = vmatprep.subr.mxu0 0.0
    %1084 = vmatpush1.msra.mxu0 0.0
    %1085 = vmatprep.subr.mxu0 0.0
    %1086 = vmatpush1.msra.mxu0 0.0
    %1087 = vmatprep.subr.mxu0 0.0
    %1088 = vmatpush1.msra.mxu0 0.0
    %1089 = vmatprep.subr.mxu0 0.0
    %1090 = vmatpush1.msra.mxu0 0.0
    %1091 = vmatprep.subr.mxu0 0.0
    %1092 = vmatpush1.msra.mxu0 0.0
    %1093 = vmatprep.subr.mxu0 0.0
    %1094 = vmatpush1.msra.mxu0 0.0
    %1095 = vmatprep.subr.mxu0 0.0
    %1096 = vmatpush1.msra.mxu0 0.0
    %1097 = vmatprep.subr.mxu0 0.0
    %1098 = vmatpush1.msra.mxu0 0.0
    %1099 = vmatprep.subr.mxu0 0.0
    %1100 = vmatpush1.msra.mxu0 0.0
    %1101 = vmatprep.subr.mxu0 0.0
    %1102 = vmatpush1.msra.mxu0 0.0
    %1103 = vmatprep.subr.mxu0 0.0
    %1104 = vmatpush1.msra.mxu0 0.0
    %1105 = vmatprep.subr.mxu0 0.0
    %1106 = vmatpush1.msra.mxu0 0.0
    %1107 = vmatprep.subr.mxu0 0.0
    %1108 = vmatpush1.msra.mxu0 0.0
    %1109 = vmatprep.subr.mxu0 0.0
    %1110 = vmatpush1.msra.mxu0 0.0
    %1111 = vmatprep.subr.mxu0 0.0
    %1112 = vmatpush1.msra.mxu0 0.0
    %1113 = vmatprep.mubr.f32.mxu0 0.0
    %1114 = vmatmul.mubr.f32.gmra.mrb[0].mxu0 %v1047
    %v1115 = vpop.f32.mrb[0].mxu0
    %v1116 = vadd.f32 %v1043, %v1115
    %v1117 = vpop.f32.mrb[0].mxu0
    %1118 = vdwg.mxu0
    %v1119 = vadd.f32 %v1116, %v40
    %v1120 = vadd.f32 %v710, %v965
    %v1121 = vadd.f32 %v711, %v970
    %v1122 = vadd.f32 %v712, %v1119
    %v1124 = vsel %vm399, %v965, 0
    %v1127 = vsel %vm399, %v970, 0
    %v1130 = vsel %vm399, %v1119, 0
    %1132 = vmatprep.subr.mxu0 0.0
    %1133 = vmatpush1.xpose.msra.mxu0 %v1130
    %1134 = vmatprep.subr.mxu0 0.0
    %1135 = vmatpush1.xpose.msra.mxu0 0.0
    %1136 = vmatprep.subr.mxu0 0.0
    %1137 = vmatpush1.xpose.msra.mxu0 0.0
    %1138 = vmatprep.subr.mxu0 0.0
    %1139 = vmatpush1.xpose.msra.mxu0 0.0
    %1140 = vmatprep.subr.mxu0 0.0
    %1141 = vmatpush1.xpose.msra.mxu0 0.0
    %1142 = vmatprep.subr.mxu0 0.0
    %1143 = vmatpush1.xpose.msra.mxu0 0.0
    %1144 = vmatprep.subr.mxu0 0.0
    %1145 = vmatpush1.xpose.msra.mxu0 0.0
    %1146 = vmatprep.subr.mxu0 0.0
    %1147 = vmatpush1.xpose.msra.mxu0 0.0
    %1148 = vmatprep.subr.mxu0 0.0
    %1149 = vmatpush1.xpose.msra.mxu0 0.0
    %1150 = vmatprep.subr.mxu0 0.0
    %1151 = vmatpush1.xpose.msra.mxu0 0.0
    %1152 = vmatprep.subr.mxu0 0.0
    %1153 = vmatpush1.xpose.msra.mxu0 0.0
    %1154 = vmatprep.subr.mxu0 0.0
    %1155 = vmatpush1.xpose.msra.mxu0 0.0
    %1156 = vmatprep.subr.mxu0 0.0
    %1157 = vmatpush1.xpose.msra.mxu0 0.0
    %1158 = vmatprep.subr.mxu0 0.0
    %1159 = vmatpush1.xpose.msra.mxu0 0.0
    %1160 = vmatprep.subr.mxu0 0.0
    %1161 = vmatpush1.xpose.msra.mxu0 0.0
    %1162 = vmatprep.subr.mxu0 0.0
    %1163 = vmatpush1.xpose.msra.mxu0 0.0
    %1164 = vmatprep.subr.mxu0 0.0
    %1165 = vmatpush1.xpose.msra.mxu0 0.0
    %1166 = vmatprep.subr.mxu0 0.0
    %1167 = vmatpush1.xpose.msra.mxu0 0.0
    %1168 = vmatprep.subr.mxu0 0.0
    %1169 = vmatpush1.xpose.msra.mxu0 0.0
    %1170 = vmatprep.subr.mxu0 0.0
    %1171 = vmatpush1.xpose.msra.mxu0 0.0
    %1172 = vmatprep.subr.mxu0 0.0
    %1173 = vmatpush1.xpose.msra.mxu0 0.0
    %1174 = vmatprep.subr.mxu0 0.0
    %1175 = vmatpush1.xpose.msra.mxu0 0.0
    %1176 = vmatprep.subr.mxu0 0.0
    %1177 = vmatpush1.xpose.msra.mxu0 0.0
    %1178 = vmatprep.subr.mxu0 0.0
    %1179 = vmatpush1.xpose.msra.mxu0 0.0
    %1180 = vmatprep.subr.mxu0 0.0
    %1181 = vmatpush1.xpose.msra.mxu0 0.0
    %1182 = vmatprep.subr.mxu0 0.0
    %1183 = vmatpush1.xpose.msra.mxu0 0.0
    %1184 = vmatprep.subr.mxu0 0.0
    %1185 = vmatpush1.xpose.msra.mxu0 0.0
    %1186 = vmatprep.subr.mxu0 0.0
    %1187 = vmatpush1.xpose.msra.mxu0 0.0
    %1188 = vmatprep.subr.mxu0 0.0
    %1189 = vmatpush1.xpose.msra.mxu0 0.0
    %1190 = vmatprep.subr.mxu0 0.0
    %1191 = vmatpush1.xpose.msra.mxu0 0.0
    %1192 = vmatprep.subr.mxu0 0.0
    %1193 = vmatpush1.xpose.msra.mxu0 0.0
    %1194 = vmatprep.subr.mxu0 0.0
    %1195 = vmatpush1.xpose.msra.mxu0 0.0
    %1196 = vmatprep.mubr.f32.mxu0 0.0
    %1197 = vmatmul.mubr.f32.gmra.mrb[0].mxu0 %v1124
    %v1198 = vpop.f32.mrb[0].mxu0
    %v1199 = vadd.f32 0.0, %v1198
    %v1200 = vpop.f32.mrb[0].mxu0
    %1201 = vmatprep.mubr.f32.mxu0 0.0
    %1202 = vmatmul.mubr.f32.gmra.mrb[0].mxu0 %v1127
    %v1203 = vpop.f32.mrb[0].mxu0
    %v1204 = vadd.f32 0.0, %v1203
    %v1205 = vpop.f32.mrb[0].mxu0
    %1206 = vdwg.mxu0
    %vm1207 = vcmp.ge.f32.partialorder %v1199, 0.0
    %vm1208 = vcmp.ge.f32.partialorder %v1204, 0.0
    %v1209 = vmul.f32 %v1199, 0.2
    %v1210 = vmul.f32 %v1204, 0.2
    %v1211 = vsel %vm1207, %v1199, %v1209
    %v1212 = vsel %vm1208, %v1204, %v1210
    %v1213 = vadd.f32 %v803, %v1211
    %v1214 = vadd.f32 %v804, %v1212
    %v1215 = vmul.f32 %v1120, 0.5
    %v1216 = vmul.f32 %v1121, 0.5
    %1217 = vst.msk [vmem:[#allocation2] sm:$0xff] %vm399, %v1215
    %1218 = vst.msk [vmem:[#allocation2 + $0x8] sm:$0xff] %vm399, %v1216
    %v1219 = vmul.f32 %v1122, 0.5
    %1220 = vst.msk [vmem:[#allocation4] sm:$0xff] %vm399, %v1219
    %v1221 = vmul.f32 %v1213, 0.5
    %v1222 = vmul.f32 %v1214, 0.5
    %v1223 = vsel %vm562, %v1221, -inf
    %1224 = vmax.xlane.f32.xlu0 %v1223
    %v1225 = vpop.xlane.xlu0 %1224
    %v1226 = vsel %vm562, %v1222, -inf
    %1227 = vmax.xlane.f32.xlu0 %v1226
    %v1228 = vpop.xlane.xlu0 %1227
    %v1229 = vsub.f32 %v1221, %v1225
    %v1230 = vsub.f32 %v1222, %v1228
    %v1231 = vmul.f32 %v1229, 1.442695
    %v1232 = vpow.pop %v1231
    %v1233 = vmul.f32 %v1230, 1.442695
    %v1234 = vpow.pop %v1233
    %v1235 = vsel %vm562, %v1232, 0.0
    %1236 = vadd.xlane.f32.xlu0 %v1235
    %v1237 = vpop.xlane.xlu0 %1236
    %v1238 = vsel %vm562, %v1234, 0.0
    %1239 = vadd.xlane.f32.xlu0 %v1238
    %v1240 = vpop.xlane.xlu0 %1239
    %v1241 = vrcp.pop %v1237
    %v1242 = vrcp.pop %v1240
    %v1243 = vmul.f32 %v1232, %v1241
    %v1244 = vmul.f32 %v1234, %v1242
    %1245 = vst.msk [vmem:[%s9] sm:$0xff] %vm562, %v1243
    %1246 = vst.msk [vmem:[%s9 + $0x8] sm:$0xff] %vm562, %v1244
    // Predicated region
    $region38: #{tpu_custom_call.1} parent=1 // pred_check
      _
    $region39: #{tpu_custom_call.1} parent=1 // pred_check_branch
      %1248 = sbr.rel (0) target = $region41
    $region40: #{tpu_custom_call.1} parent=1 // pred_region
      _
    $region41: #{tpu_custom_call.1} parent=1 // pred_fallthru
      _
    // Predicated region
    $region42: #{tpu_custom_call.1} parent=1 // pred_check
      _
    $region43: #{tpu_custom_call.1} parent=1 // pred_check_branch
      %1250 = sbr.rel (0) target = $region45
    $region44: #{tpu_custom_call.1} parent=1 // pred_region
      %s1252 = ssub.s32 256, 256
      %1253 = vsyncadd [#allocation3], %s1252
      %s1254 = sshll.u32 [#allocation2], 4
      %s1255 = int_to_ptr.vmem [resolvable:$true] %s1254
      %1260 = dma.vmem_to_hbm [thread:$0]  %s1255, 256, %s10, [#allocation3], 128, 128, 8
    $region45: #{tpu_custom_call.1} parent=1 // pred_fallthru
      _
    // Predicated region
    $region46: #{tpu_custom_call.1} parent=1 // pred_check
      _
    $region47: #{tpu_custom_call.1} parent=1 // pred_check_branch
      %1262 = sbr.rel (0) target = $region49
    $region48: #{tpu_custom_call.1} parent=1 // pred_region
      %s1264 = ssub.s32 128, 128
      %1265 = vsyncadd [#allocation5], %s1264
      %s1267 = sshll.u32 [#allocation4], 4
      %s1268 = int_to_ptr.vmem [resolvable:$true] %s1267
      %1270 = dma.vmem_to_hbm [thread:$0]  %s1268, 128, %s11, [#allocation5]
    $region49: #{tpu_custom_call.1} parent=1 // pred_fallthru
      _
    // Predicated region
    $region50: #{tpu_custom_call.1} parent=1 // pred_check
      _
    $region51: #{tpu_custom_call.1} parent=1 // pred_check_branch
      %1272 = sbr.rel (0) target = $region53
    $region52: #{tpu_custom_call.1} parent=1 // pred_region
      _
    $region53: #{tpu_custom_call.1} parent=1 // pred_fallthru
      _
    // Predicated region
    $region54: #{tpu_custom_call.1} parent=1 // pred_check
      _
    $region55: #{tpu_custom_call.1} parent=1 // pred_check_branch
      %1274 = sbr.rel (0) target = $region57
    $region56: #{tpu_custom_call.1} parent=1 // pred_region
      %1275 = dma.done [#allocation3], 256
    $region57: #{tpu_custom_call.1} parent=1 // pred_fallthru
      _
    // Predicated region
    $region58: #{tpu_custom_call.1} parent=1 // pred_check
      _
    $region59: #{tpu_custom_call.1} parent=1 // pred_check_branch
      %1277 = sbr.rel (0) target = $region61
    $region60: #{tpu_custom_call.1} parent=1 // pred_region
      %1278 = dma.done [#allocation5], 128
    $region61: #{tpu_custom_call.1} parent=1 // pred_fallthru
      _
    %1279 = vsyncpa [#allocation3], 1
    %1280 = vsyncpa [#allocation5], 1

</llo_original>
